<compile_context>
chip_gen: v7x
topology: tpu7x:2x2x1
jax: 0.10.0
libtpu: 0.0.40
codegen_flags: <defaults>
</compile_context>

<pallas_src>
import functools

import jax
import jax.numpy as jnp
from jax import lax
from jax.experimental import pallas as pl
from jax.experimental.pallas import tpu as pltpu

LEAKY_SLOPE = 0.2
BN_EPS = 1e-5
# 48 MiB: below v7x's 64 MiB physical VMEM, above v5e's 16 MiB default scoped limit.
_VMEM_LIMIT_BYTES = 48 * 1024 * 1024


def _leaky_relu(x):
    return jnp.where(x > 0, x, LEAKY_SLOPE * x)


def _conv1(x_ref, w1_ref, b1_ref):
    """conv1 (+bias) + LeakyReLU, channels-as-rows layout. Returns f32 [ndf, tile_p]."""
    h1 = jnp.dot(w1_ref[...], x_ref[...],                    # bf16 x bf16 -> f32 (MXU)
                 preferred_element_type=jnp.float32) + b1_ref[...]
    return _leaky_relu(h1)


# ---------------------------------------------------------------------------
# Pass 1: accumulate sum(h1) and the h1 Gram matrix (global BatchNorm stats are
# finished in the wrapper via mean(h2) = W2 mean(h1), E[h2^2] = diag(W2 (G/P) W2^T)).
# ---------------------------------------------------------------------------
def _stats_kernel(x_ref, w1_ref, b1_ref, sum_ref, gram_ref):
    @pl.when(pl.program_id(1) == 0)
    def _():
        sum_ref[...] = jnp.zeros_like(sum_ref)
        gram_ref[...] = jnp.zeros_like(gram_ref)

    h1 = _conv1(x_ref, w1_ref, b1_ref)                       # [ndf, tile_p] f32
    h1_b = h1.astype(jnp.bfloat16)

    sum_ref[...] += jnp.sum(h1, axis=1, keepdims=True)       # [ndf, 1] f32
    # G += h1 @ h1^T, contracting the pixel/lane axis (MXU, f32 accumulation).
    gram_ref[...] += lax.dot_general(h1_b, h1_b, (((1,), (1,)), ((), ())),
                                     preferred_element_type=jnp.float32)


# ---------------------------------------------------------------------------
# Pass 2: recompute h1, conv2 with BN-scale pre-folded weights, + shift,
# LeakyReLU, conv3 channel reduce.  Lane-dense [1, tile_p] output.
# ---------------------------------------------------------------------------
def _apply_kernel(x_ref, w1_ref, b1_ref, w2s_ref, shift_ref, w3_ref, o_ref):
    h1 = _conv1(x_ref, w1_ref, b1_ref)                       # [ndf, tile_p] f32
    h2 = jnp.dot(w2s_ref[...], h1.astype(jnp.bfloat16),      # BN scale folded into w2s
                 preferred_element_type=jnp.float32)
    h2 = _leaky_relu(h2 + shift_ref[...])                    # folded BN shift + LeakyReLU
    # conv3 (2*ndf -> 1, bias=False): broadcast-multiply + sublane reduce (VPU/XLU).
    o_ref[...] = jnp.sum(h2 * w3_ref[...], axis=0, keepdims=True)


def pixel_discriminator_forward(x_nchw, params, *, tile_p=8192, num_stats_cores=2):
    """x_nchw: [N, C, H, W] float32.  Returns [N, 1, H, W] float32."""
    assert tile_p % 128 == 0, "pixel tile must be a multiple of the 128-lane width"
    n, cin, h, w = x_nchw.shape
    p = n * h * w
    assert p > 0 and num_stats_cores >= 1

    w1 = params["w1"]        # [ndf, cin]   (== squeezed PyTorch weight [Cout, Cin, 1, 1])
    b1 = params["b1"]        # [ndf, 1]
    w2 = params["w2"]        # [2*ndf, ndf]
    gamma = params["gamma"]  # [2*ndf]
    beta = params["beta"]    # [2*ndf]
    w3 = params["w3"]        # [2*ndf, 1]
    ndf = w1.shape[0]
    c2 = w2.shape[0]
    assert ndf % 8 == 0 and c2 % 8 == 0

    # --- Layout: NCHW -> [C, P]; pad channels to a multiple of 8 (clean sublane layout
    # for the MXU conv1) and pixels to num_stats_cores * tiles_per_core * tile_p.
    # TODO(synk): read x in its native [N, C, H*W] layout inside the kernels (per-image
    # pixel tiling) to avoid this extra wrapper-side transpose/pad/bf16 HBM sweep.
    cin_p = ((cin + 7) // 8) * 8
    num_tiles = pl.cdiv(p, tile_p)
    tiles_per_core = pl.cdiv(num_tiles, num_stats_cores)
    total_tiles = num_stats_cores * tiles_per_core
    p_pad = total_tiles * tile_p

    x_cp = jnp.transpose(x_nchw, (1, 0, 2, 3)).reshape(cin, p)
    x_cp = jnp.pad(x_cp, ((0, cin_p - cin), (0, p_pad - p))).astype(jnp.bfloat16)
    w1_b = jnp.pad(w1, ((0, 0), (0, cin_p - cin))).astype(jnp.bfloat16)

    # ---- Pass 1: per-core partial sum(h1) / Gram(h1) --------------------------------
    stats_flops = 2 * p_pad * (cin_p * ndf + ndf * ndf) + 4 * p_pad * ndf
    sum_part, gram_part = pl.pallas_call(
        _stats_kernel,
        grid=(num_stats_cores, tiles_per_core),
        in_specs=[
            pl.BlockSpec((cin_p, tile_p),
                         lambda c, i, T=tiles_per_core: (0, c * T + i)),
            pl.BlockSpec((ndf, cin_p), lambda c, i: (0, 0)),
            pl.BlockSpec((ndf, 1), lambda c, i: (0, 0)),
        ],
        out_specs=(pl.BlockSpec((ndf, 1), lambda c, i: (c, 0)),
                   pl.BlockSpec((ndf, ndf), lambda c, i: (c, 0))),
        out_shape=(jax.ShapeDtypeStruct((num_stats_cores * ndf, 1), jnp.float32),
                   jax.ShapeDtypeStruct((num_stats_cores * ndf, ndf), jnp.float32)),
        compiler_params=pltpu.CompilerParams(
            dimension_semantics=("parallel", "arbitrary"),
            vmem_limit_bytes=_VMEM_LIMIT_BYTES),
        cost_estimate=pl.CostEstimate(
            flops=stats_flops, transcendentals=0,
            bytes_accessed=p_pad * cin_p * 2 + ndf * cin_p * 2 + ndf * 4
            + num_stats_cores * (ndf * 4 + ndf * ndf * 4)),
    )(x_cp, w1_b, b1)

    sum_h1 = sum_part.reshape(num_stats_cores, ndf, 1).sum(axis=0)    # [ndf, 1]
    gram = gram_part.reshape(num_stats_cores, ndf, ndf).sum(axis=0)   # [ndf, ndf]

    # Analytic removal of padded pixels: each zero x column yields h1 = leaky_relu(b1)
    # exactly, so no in-kernel masking is needed.
    n_pad = p_pad - p
    pad_h1 = _leaky_relu(b1)                                          # [ndf, 1] f32
    pad_h1b = pad_h1.astype(jnp.bfloat16).astype(jnp.float32)         # value entering Gram
    sum_h1 = sum_h1 - n_pad * pad_h1
    gram = gram - n_pad * (pad_h1b @ pad_h1b.T)

    # ---- Fold BN (training-mode batch stats) into conv2 scale + per-channel shift ----
    w2f = w2.astype(jnp.bfloat16).astype(jnp.float32)   # matches in-kernel operand rounding
    mean_h1 = sum_h1 / p
    mean_h2 = w2f @ mean_h1                                            # [c2, 1]
    e_h2_sq = jnp.sum((w2f @ (gram / p)) * w2f, axis=1, keepdims=True) # [c2, 1]
    var = jnp.maximum(e_h2_sq - mean_h2 * mean_h2, 0.0)                # biased variance
    inv_std = lax.rsqrt(var + BN_EPS)
    scale = gamma.reshape(c2, 1) * inv_std
    shift = beta.reshape(c2, 1) - mean_h2 * scale
    w2s_b = (scale * w2).astype(jnp.bfloat16)            # fold scale into f32 weights, then cast
    # TODO(synk): running_mean / running_var momentum buffer updates (PyTorch BatchNorm2d
    # training-only side effect) are not produced; forward output is unaffected.

    # ---- Pass 2: conv1 + scaled conv2 + shift + LeakyReLU + conv3, lane-dense output --
    apply_flops = 2 * p_pad * (cin_p * ndf + ndf * c2) + 6 * p_pad * c2
    out = pl.pallas_call(
        _apply_kernel,
        grid=(total_tiles,),
        in_specs=[pl.BlockSpec((cin_p, tile_p), lambda i: (0, i)),
                  pl.BlockSpec((ndf, cin_p), lambda i: (0, 0)),
                  pl.BlockSpec((ndf, 1), lambda i: (0, 0)),
                  pl.BlockSpec((c2, ndf), lambda i: (0, 0)),
                  pl.BlockSpec((c2, 1), lambda i: (0, 0)),
                  pl.BlockSpec((c2, 1), lambda i: (0, 0))],
        out_specs=pl.BlockSpec((1, tile_p), lambda i: (0, i)),
        out_shape=jax.ShapeDtypeStruct((1, p_pad), jnp.float32),
        compiler_params=pltpu.CompilerParams(
            dimension_semantics=("parallel",),
            vmem_limit_bytes=_VMEM_LIMIT_BYTES),
        cost_estimate=pl.CostEstimate(
            flops=apply_flops, transcendentals=0,
            bytes_accessed=p_pad * cin_p * 2 + p_pad * 4
            + (ndf * cin_p + c2 * ndf) * 2 + (ndf + 2 * c2 + c2) * 4),
    )(x_cp, w1_b, b1, w2s_b, shift, w3)
    # TODO(synk): on v7x it can be faster to stash bf16 h2 to HBM in pass 1 instead of
    # recomputing conv1/conv2 here (idle 3.2 TB/s HBM vs the saturated VALU slot).

    # [1, P_pad] -> [N, 1, H, W]
    return out[0, :p].reshape(n, h, w)[:, None, :, :]


def init_params(key, input_nc, ndf=64):
    """Deterministic synthetic init (GAN-style N(0, 0.02) conv weights)."""
    k1, k2, k3, kb = jax.random.split(key, 4)
    c2 = 2 * ndf
    return {
        # conv weights stored as [Cout, Cin] (squeezed PyTorch [Cout, Cin, 1, 1])
        "w1": 0.02 * jax.random.normal(k1, (ndf, input_nc), jnp.float32),
        "b1": 0.02 * jax.random.normal(kb, (ndf, 1), jnp.float32),
        "w2": 0.02 * jax.random.normal(k2, (c2, ndf), jnp.float32),
        "gamma": jnp.ones((c2,), jnp.float32),   # BatchNorm2d affine init
        "beta": jnp.zeros((c2,), jnp.float32),
        "w3": 0.02 * jax.random.normal(k3, (c2, 1), jnp.float32),
    }


def _reference_forward(x_nchw, params):
    """Pure-JAX reference: straightforward (unfused) BatchNorm math with the same
    bf16-operand / f32-accumulate matmul precision as the kernel."""
    n, c, h, w = x_nchw.shape
    xt = jnp.transpose(x_nchw, (1, 0, 2, 3)).reshape(c, n * h * w).astype(jnp.bfloat16)
    w1 = params["w1"].astype(jnp.bfloat16)
    w2 = params["w2"].astype(jnp.bfloat16)
    h1 = _leaky_relu(jnp.dot(w1, xt, preferred_element_type=jnp.float32) + params["b1"])
    h2 = jnp.dot(w2, h1.astype(jnp.bfloat16), preferred_element_type=jnp.float32)
    mean = jnp.mean(h2, axis=1, keepdims=True)
    var = jnp.mean((h2 - mean) ** 2, axis=1, keepdims=True)
    h2 = (h2 - mean) * lax.rsqrt(var + BN_EPS) * params["gamma"][:, None] + params["beta"][:, None]
    out = jnp.sum(_leaky_relu(h2) * params["w3"], axis=0)
    return out.reshape(n, h, w)[:, None, :, :]


if __name__ == "__main__":
    N, C, H, W = 2, 4, 16, 16     # input_nc = 4, P = 512 pixels
    NDF = 64

    key = jax.random.PRNGKey(0)
    kx, kp = jax.random.split(key)
    x = jax.random.normal(kx, (N, C, H, W), jnp.float32)
    params = init_params(kp, input_nc=C, ndf=NDF)
    y_ref = _reference_forward(x, params)

    # Three configs:
    #  1) tile_p=128: 4 pixel tiles, 2 per stats core -> exercises cross-tile accumulation
    #     and the 2-core "parallel" stats grid (no padding).
    #  2) tile_p=384: partial last tile -> exercises the analytic padded-pixel correction.
    #  3) defaults (tile_p=8192, 48 MiB VMEM limit): the production configuration.
    configs = [dict(tile_p=128, num_stats_cores=2),
               dict(tile_p=384, num_stats_cores=2),
               dict()]
    for cfg in configs:
        fwd = jax.jit(functools.partial(pixel_discriminator_forward, **cfg))
        y = jax.block_until_ready(fwd(x, params))
        assert y.shape == (N, 1, H, W), (cfg, y.shape)
        # Tolerance covers bf16 operand rounding of the BN-scale-folded conv2 weights
        # and the Gram-identity (E[x^2]-mean^2) stats path; real bugs are O(0.1+).
        assert jnp.allclose(y, y_ref, atol=1e-2, rtol=1e-2), (
            cfg, "max abs err = " + str(float(jnp.max(jnp.abs(y - y_ref)))))

    print("KERNEL_OK")
</pallas_src>

<mosaic_0001>
module attributes {stable_mosaic.version = 11 : i64} {
  func.func @_stats_kernel(%arg0: i32, %arg1: i32, %arg2: memref<8x128xbf16, #tpu.memory_space<vmem>>, %arg3: memref<64x8xbf16, #tpu.memory_space<vmem>>, %arg4: memref<64x1xf32, #tpu.memory_space<vmem>>, %arg5: memref<64x1xf32, #tpu.memory_space<vmem>>, %arg6: memref<64x64xf32, #tpu.memory_space<vmem>>) attributes {dimension_semantics = [#tpu.dimension_semantics<parallel>, #tpu.dimension_semantics<arbitrary>], iteration_bounds = array<i64: 2, 2>, scalar_prefetch = 0 : i64, scratch_operands = 0 : i64, tpu.core_type = #tpu.core_type<tc>, window_params = [{transform_indices = @transform_0, window_bounds = array<i64: 8, 128>}, {pipeline_mode = #tpu.pipeline_mode<synchronous>, transform_indices = @transform_1, window_bounds = array<i64: 64, 8>}, {pipeline_mode = #tpu.pipeline_mode<synchronous>, transform_indices = @transform_2, window_bounds = array<i64: 64, 1>}, {transform_indices = @transform_3, window_bounds = array<i64: 64, 1>}, {transform_indices = @transform_4, window_bounds = array<i64: 64, 64>}]} {
    %c0_i32 = arith.constant 0 : i32
    %0 = arith.cmpi eq, %arg1, %c0_i32 : i32
    %1 = arith.extui %0 : i1 to i32
    %c0_i32_0 = arith.constant 0 : i32
    %2 = arith.cmpi ne, %1, %c0_i32_0 : i32
    scf.if %2 {
      %cst_18 = arith.constant 0.000000e+00 : f32
      %24 = vector.broadcast %cst_18 : f32 to vector<64x1xf32>
      %c0_19 = arith.constant 0 : index
      %c0_20 = arith.constant 0 : index
      %25 = vector.load %arg5[%c0_19, %c0_20] : memref<64x1xf32, #tpu.memory_space<vmem>>, vector<64x1xf32>
      tpu.vector_store %arg5[%c0_19, %c0_20], %24 {strides = array<i32>} : memref<64x1xf32, #tpu.memory_space<vmem>>, vector<64x1xf32>,
      %cst_21 = arith.constant 0.000000e+00 : f32
      %26 = vector.broadcast %cst_21 : f32 to vector<64x64xf32>
      %c0_22 = arith.constant 0 : index
      %c0_23 = arith.constant 0 : index
      %27 = vector.load %arg6[%c0_22, %c0_23] : memref<64x64xf32, #tpu.memory_space<vmem>>, vector<64x64xf32>
      tpu.vector_store %arg6[%c0_22, %c0_23], %26 {strides = array<i32>} : memref<64x64xf32, #tpu.memory_space<vmem>>, vector<64x64xf32>,
    } else {
    }
    %c0 = arith.constant 0 : index
    %c0_1 = arith.constant 0 : index
    %3 = vector.load %arg3[%c0, %c0_1] : memref<64x8xbf16, #tpu.memory_space<vmem>>, vector<64x8xbf16>
    %c0_2 = arith.constant 0 : index
    %c0_3 = arith.constant 0 : index
    %4 = vector.load %arg2[%c0_2, %c0_3] : memref<8x128xbf16, #tpu.memory_space<vmem>>, vector<8x128xbf16>
    %cst = arith.constant dense<0.000000e+00> : vector<64x128xf32>
    %5 = tpu.matmul %3, %4, %cst {dimension_numbers = #tpu.dot_dimension_numbers<[1], [0], [0], [1], [0, 0, 1, 1], [], []>} : vector<64x8xbf16>, vector<8x128xbf16>, vector<64x128xf32> -> vector<64x128xf32>
    %c0_4 = arith.constant 0 : index
    %c0_5 = arith.constant 0 : index
    %6 = vector.load %arg4[%c0_4, %c0_5] : memref<64x1xf32, #tpu.memory_space<vmem>>, vector<64x1xf32>
    %7 = vector.broadcast %6 : vector<64x1xf32> to vector<64x128xf32>
    %8 = arith.addf %5, %7 : vector<64x128xf32>
    %cst_6 = arith.constant 0.000000e+00 : f32
    %9 = vector.broadcast %cst_6 : f32 to vector<64x128xf32>
    %10 = arith.cmpf ogt, %8, %9 : vector<64x128xf32>
    %cst_7 = arith.constant 2.000000e-01 : f32
    %11 = vector.broadcast %cst_7 : f32 to vector<64x128xf32>
    %12 = arith.mulf %11, %8 : vector<64x128xf32>
    %13 = arith.select %10, %8, %12 : vector<64x128xi1>, vector<64x128xf32>
    %14 = arith.truncf %13 : vector<64x128xf32> to vector<64x128xbf16>
    %c0_8 = arith.constant 0 : index
    %c0_9 = arith.constant 0 : index
    %15 = vector.load %arg5[%c0_8, %c0_9] : memref<64x1xf32, #tpu.memory_space<vmem>>, vector<64x1xf32>
    %cst_10 = arith.constant dense<0.000000e+00> : vector<64xf32>
    %16 = vector.multi_reduction <add>, %13, %cst_10 [1] : vector<64x128xf32> to vector<64xf32>
    %17 = vector.shape_cast %16 : vector<64xf32> to vector<64x1xf32>
    %18 = arith.addf %15, %17 : vector<64x1xf32>
    %c0_11 = arith.constant 0 : index
    %c0_12 = arith.constant 0 : index
    %19 = vector.load %arg5[%c0_11, %c0_12] : memref<64x1xf32, #tpu.memory_space<vmem>>, vector<64x1xf32>
    tpu.vector_store %arg5[%c0_11, %c0_12], %18 {strides = array<i32>} : memref<64x1xf32, #tpu.memory_space<vmem>>, vector<64x1xf32>,
    %c0_13 = arith.constant 0 : index
    %c0_14 = arith.constant 0 : index
    %20 = vector.load %arg6[%c0_13, %c0_14] : memref<64x64xf32, #tpu.memory_space<vmem>>, vector<64x64xf32>
    %cst_15 = arith.constant dense<0.000000e+00> : vector<64x64xf32>
    %21 = tpu.matmul %14, %14, %cst_15 {dimension_numbers = #tpu.dot_dimension_numbers<[1], [1], [0], [0], [0, 0, 1, 0], [], []>} : vector<64x128xbf16>, vector<64x128xbf16>, vector<64x64xf32> -> vector<64x64xf32>
    %22 = arith.addf %20, %21 : vector<64x64xf32>
    %c0_16 = arith.constant 0 : index
    %c0_17 = arith.constant 0 : index
    %23 = vector.load %arg6[%c0_16, %c0_17] : memref<64x64xf32, #tpu.memory_space<vmem>>, vector<64x64xf32>
    tpu.vector_store %arg6[%c0_16, %c0_17], %22 {strides = array<i32>} : memref<64x64xf32, #tpu.memory_space<vmem>>, vector<64x64xf32>,
    return
  }
  func.func @transform_0(%arg0: i32, %arg1: i32) -> (i32, i32) {
    %c2_i32 = arith.constant 2 : i32
    %0 = arith.muli %arg0, %c2_i32 : i32
    %1 = arith.addi %0, %arg1 : i32
    %c0_i32 = arith.constant 0 : i32
    %c0_i32_0 = arith.constant 0 : i32
    return %c0_i32, %1 : i32, i32
  }
  func.func @transform_1(%arg0: i32, %arg1: i32) -> (i32, i32) {
    %c0_i32 = arith.constant 0 : i32
    %c0_i32_0 = arith.constant 0 : i32
    %c0_i32_1 = arith.constant 0 : i32
    return %c0_i32, %c0_i32_0 : i32, i32
  }
  func.func @transform_2(%arg0: i32, %arg1: i32) -> (i32, i32) {
    %c0_i32 = arith.constant 0 : i32
    %c0_i32_0 = arith.constant 0 : i32
    %c0_i32_1 = arith.constant 0 : i32
    return %c0_i32, %c0_i32_0 : i32, i32
  }
  func.func @transform_3(%arg0: i32, %arg1: i32) -> (i32, i32) {
    %c0_i32 = arith.constant 0 : i32
    %c0_i32_0 = arith.constant 0 : i32
    return %arg0, %c0_i32 : i32, i32
  }
  func.func @transform_4(%arg0: i32, %arg1: i32) -> (i32, i32) {
    %c0_i32 = arith.constant 0 : i32
    %c0_i32_0 = arith.constant 0 : i32
    return %arg0, %c0_i32 : i32, i32
  }
}

module attributes {stable_mosaic.version = 11 : i64} {
  func.func @_apply_kernel(%arg0: i32, %arg1: memref<8x128xbf16, #tpu.memory_space<vmem>>, %arg2: memref<64x8xbf16, #tpu.memory_space<vmem>>, %arg3: memref<64x1xf32, #tpu.memory_space<vmem>>, %arg4: memref<128x64xbf16, #tpu.memory_space<vmem>>, %arg5: memref<128x1xf32, #tpu.memory_space<vmem>>, %arg6: memref<128x1xf32, #tpu.memory_space<vmem>>, %arg7: memref<1x128xf32, #tpu.memory_space<vmem>>) attributes {dimension_semantics = [#tpu.dimension_semantics<parallel>], iteration_bounds = array<i64: 4>, scalar_prefetch = 0 : i64, scratch_operands = 0 : i64, tpu.core_type = #tpu.core_type<tc>, window_params = [{transform_indices = @transform_0, window_bounds = array<i64: 8, 128>}, {pipeline_mode = #tpu.pipeline_mode<synchronous>, transform_indices = @transform_1, window_bounds = array<i64: 64, 8>}, {pipeline_mode = #tpu.pipeline_mode<synchronous>, transform_indices = @transform_2, window_bounds = array<i64: 64, 1>}, {pipeline_mode = #tpu.pipeline_mode<synchronous>, transform_indices = @transform_3, window_bounds = array<i64: 128, 64>}, {pipeline_mode = #tpu.pipeline_mode<synchronous>, transform_indices = @transform_4, window_bounds = array<i64: 128, 1>}, {pipeline_mode = #tpu.pipeline_mode<synchronous>, transform_indices = @transform_5, window_bounds = array<i64: 128, 1>}, {transform_indices = @transform_6, window_bounds = array<i64: 1, 128>}]} {
    %c0 = arith.constant 0 : index
    %c0_0 = arith.constant 0 : index
    %0 = vector.load %arg2[%c0, %c0_0] : memref<64x8xbf16, #tpu.memory_space<vmem>>, vector<64x8xbf16>
    %c0_1 = arith.constant 0 : index
    %c0_2 = arith.constant 0 : index
    %1 = vector.load %arg1[%c0_1, %c0_2] : memref<8x128xbf16, #tpu.memory_space<vmem>>, vector<8x128xbf16>
    %cst = arith.constant dense<0.000000e+00> : vector<64x128xf32>
    %2 = tpu.matmul %0, %1, %cst {dimension_numbers = #tpu.dot_dimension_numbers<[1], [0], [0], [1], [0, 0, 1, 1], [], []>} : vector<64x8xbf16>, vector<8x128xbf16>, vector<64x128xf32> -> vector<64x128xf32>
    %c0_3 = arith.constant 0 : index
    %c0_4 = arith.constant 0 : index
    %3 = vector.load %arg3[%c0_3, %c0_4] : memref<64x1xf32, #tpu.memory_space<vmem>>, vector<64x1xf32>
    %4 = vector.broadcast %3 : vector<64x1xf32> to vector<64x128xf32>
    %5 = arith.addf %2, %4 : vector<64x128xf32>
    %cst_5 = arith.constant 0.000000e+00 : f32
    %6 = vector.broadcast %cst_5 : f32 to vector<64x128xf32>
    %7 = arith.cmpf ogt, %5, %6 : vector<64x128xf32>
    %cst_6 = arith.constant 2.000000e-01 : f32
    %8 = vector.broadcast %cst_6 : f32 to vector<64x128xf32>
    %9 = arith.mulf %8, %5 : vector<64x128xf32>
    %10 = arith.select %7, %5, %9 : vector<64x128xi1>, vector<64x128xf32>
    %c0_7 = arith.constant 0 : index
    %c0_8 = arith.constant 0 : index
    %11 = vector.load %arg4[%c0_7, %c0_8] : memref<128x64xbf16, #tpu.memory_space<vmem>>, vector<128x64xbf16>
    %12 = arith.truncf %10 : vector<64x128xf32> to vector<64x128xbf16>
    %cst_9 = arith.constant dense<0.000000e+00> : vector<128x128xf32>
    %13 = tpu.matmul %11, %12, %cst_9 {dimension_numbers = #tpu.dot_dimension_numbers<[1], [0], [0], [1], [0, 0, 1, 1], [], []>} : vector<128x64xbf16>, vector<64x128xbf16>, vector<128x128xf32> -> vector<128x128xf32>
    %c0_10 = arith.constant 0 : index
    %c0_11 = arith.constant 0 : index
    %14 = vector.load %arg5[%c0_10, %c0_11] : memref<128x1xf32, #tpu.memory_space<vmem>>, vector<128x1xf32>
    %15 = vector.broadcast %14 : vector<128x1xf32> to vector<128x128xf32>
    %16 = arith.addf %13, %15 : vector<128x128xf32>
    %cst_12 = arith.constant 0.000000e+00 : f32
    %17 = vector.broadcast %cst_12 : f32 to vector<128x128xf32>
    %18 = arith.cmpf ogt, %16, %17 : vector<128x128xf32>
    %cst_13 = arith.constant 2.000000e-01 : f32
    %19 = vector.broadcast %cst_13 : f32 to vector<128x128xf32>
    %20 = arith.mulf %19, %16 : vector<128x128xf32>
    %21 = arith.select %18, %16, %20 : vector<128x128xi1>, vector<128x128xf32>
    %c0_14 = arith.constant 0 : index
    %c0_15 = arith.constant 0 : index
    %22 = vector.load %arg6[%c0_14, %c0_15] : memref<128x1xf32, #tpu.memory_space<vmem>>, vector<128x1xf32>
    %23 = vector.broadcast %22 : vector<128x1xf32> to vector<128x128xf32>
    %24 = arith.mulf %21, %23 : vector<128x128xf32>
    %cst_16 = arith.constant dense<0.000000e+00> : vector<128xf32>
    %25 = vector.multi_reduction <add>, %24, %cst_16 [0] : vector<128x128xf32> to vector<128xf32>
    %26 = vector.shape_cast %25 : vector<128xf32> to vector<1x128xf32>
    %c0_17 = arith.constant 0 : index
    %c0_18 = arith.constant 0 : index
    %27 = vector.load %arg7[%c0_17, %c0_18] : memref<1x128xf32, #tpu.memory_space<vmem>>, vector<1x128xf32>
    tpu.vector_store %arg7[%c0_17, %c0_18], %26 {strides = array<i32>} : memref<1x128xf32, #tpu.memory_space<vmem>>, vector<1x128xf32>,
    return
  }
  func.func @transform_0(%arg0: i32) -> (i32, i32) {
    %c0_i32 = arith.constant 0 : i32
    %c0_i32_0 = arith.constant 0 : i32
    return %c0_i32, %arg0 : i32, i32
  }
  func.func @transform_1(%arg0: i32) -> (i32, i32) {
    %c0_i32 = arith.constant 0 : i32
    %c0_i32_0 = arith.constant 0 : i32
    %c0_i32_1 = arith.constant 0 : i32
    return %c0_i32, %c0_i32_0 : i32, i32
  }
  func.func @transform_2(%arg0: i32) -> (i32, i32) {
    %c0_i32 = arith.constant 0 : i32
    %c0_i32_0 = arith.constant 0 : i32
    %c0_i32_1 = arith.constant 0 : i32
    return %c0_i32, %c0_i32_0 : i32, i32
  }
  func.func @transform_3(%arg0: i32) -> (i32, i32) {
    %c0_i32 = arith.constant 0 : i32
    %c0_i32_0 = arith.constant 0 : i32
    %c0_i32_1 = arith.constant 0 : i32
    return %c0_i32, %c0_i32_0 : i32, i32
  }
  func.func @transform_4(%arg0: i32) -> (i32, i32) {
    %c0_i32 = arith.constant 0 : i32
    %c0_i32_0 = arith.constant 0 : i32
    %c0_i32_1 = arith.constant 0 : i32
    return %c0_i32, %c0_i32_0 : i32, i32
  }
  func.func @transform_5(%arg0: i32) -> (i32, i32) {
    %c0_i32 = arith.constant 0 : i32
    %c0_i32_0 = arith.constant 0 : i32
    %c0_i32_1 = arith.constant 0 : i32
    return %c0_i32, %c0_i32_0 : i32, i32
  }
  func.func @transform_6(%arg0: i32) -> (i32, i32) {
    %c0_i32 = arith.constant 0 : i32
    %c0_i32_0 = arith.constant 0 : i32
    return %c0_i32, %arg0 : i32, i32
  }
}

</mosaic_0001>

<llo_original>
// kernel: squeeze.1
$region0: #{squeeze.1}
  %s0 = inlined_call_operand.vmem [shape: f32[512], index: 0, kind: input, shape index: {}]
  %s1 = inlined_call_operand.hbm [shape: f32[2,1,16,16], index: 1, kind: output, shape index: {}]
  $region1: #{squeeze.1} parent=0
    #allocation0 [shape = 'u8[16384]{0}', space=vmem, size = 0x4000, scoped, tag = 'operand span for operand 1']
    #allocation1 [shape = 's32[1]{0}', space=sflag, size = 0x4, scoped, tag = 'scoped memory for squeeze.1']
    #allocation2 [shape = 'u8[4096]{0}', space=vmem, size = 0x1000, scoped, tag = 'scoped mem for input reshape']
    %2 = vsyncpa [#allocation1], 0
    %s4 = sshllo.u32 0, 4
    %v5 = vld [vmem:[%s0] sm:%s4]
    %6 = vst [vmem:[#allocation2] sm:%s4] %v5
    %v7 = vld [vmem:[#allocation2] sm:$0xf]
    %vm8 = vcmask 130048
    %9 = vst.msk [vmem:[#allocation0] ss:$8 sm:$0xf] %vm8, %v7
    %v10 = vld [vmem:[#allocation2] sm:$0xf]
    %11 = vrot.lane.b32.xlu0 %v10, 112
    %v12 = vpop.permute.xlu0 %11
    %vm13 = vcmask 130048
    %s14 = scalar_lea.vmem [#allocation0], 1
    %15 = vst.msk [vmem:[%s14] ss:$8 sm:$0xf] %vm13, %v12
    %v16 = vld [vmem:[#allocation2] sm:$0xf]
    %17 = vrot.lane.b32.xlu0 %v16, 96
    %v18 = vpop.permute.xlu0 %17
    %vm19 = vcmask 130048
    %s20 = scalar_lea.vmem [#allocation0], 2
    %21 = vst.msk [vmem:[%s20] ss:$8 sm:$0xf] %vm19, %v18
    %v22 = vld [vmem:[#allocation2] sm:$0xf]
    %23 = vrot.lane.b32.xlu0 %v22, 80
    %v24 = vpop.permute.xlu0 %23
    %vm25 = vcmask 130048
    %s26 = scalar_lea.vmem [#allocation0], 3
    %27 = vst.msk [vmem:[%s26] ss:$8 sm:$0xf] %vm25, %v24
    %v28 = vld [vmem:[#allocation2] sm:$0xf]
    %29 = vrot.lane.b32.xlu0 %v28, 64
    %v30 = vpop.permute.xlu0 %29
    %vm31 = vcmask 130048
    %s32 = scalar_lea.vmem [#allocation0], 4
    %33 = vst.msk [vmem:[%s32] ss:$8 sm:$0xf] %vm31, %v30
    %v34 = vld [vmem:[#allocation2] sm:$0xf]
    %35 = vrot.lane.b32.xlu0 %v34, 48
    %v36 = vpop.permute.xlu0 %35
    %vm37 = vcmask 130048
    %s38 = scalar_lea.vmem [#allocation0], 5
    %39 = vst.msk [vmem:[%s38] ss:$8 sm:$0xf] %vm37, %v36
    %v40 = vld [vmem:[#allocation2] sm:$0xf]
    %41 = vrot.lane.b32.xlu0 %v40, 32
    %v42 = vpop.permute.xlu0 %41
    %vm43 = vcmask 130048
    %s44 = scalar_lea.vmem [#allocation0], 6
    %45 = vst.msk [vmem:[%s44] ss:$8 sm:$0xf] %vm43, %v42
    %v46 = vld [vmem:[#allocation2] sm:$0xf]
    %47 = vrot.lane.b32.xlu0 %v46, 16
    %v48 = vpop.permute.xlu0 %47
    %vm49 = vcmask 130048
    %s50 = scalar_lea.vmem [#allocation0], 7
    %51 = vst.msk [vmem:[%s50] ss:$8 sm:$0xf] %vm49, %v48
    %s53 = ssub.s32 512, 512
    %54 = vsyncadd [#allocation1], %s53
    %s56 = sshll.u32 [#allocation0], 4
    %s57 = int_to_ptr.vmem [resolvable:$true] %s56
    %59 = dma.vmem_to_hbm [thread:$0]  %s57, 512, %s1, [#allocation1]
    %60 = dma.done [#allocation1], 512
    %61 = vsyncpa [#allocation1], 1

// kernel: pixel_discriminator_forward.2
$region0: #{pixel_discriminator_forward.2}
  #allocation0 [shape = 'u32[]', space=smem, size = 0x4, offset = 0x4, fixed_abs, tag = 'smem constant byte address 0x4 - core index']
  #allocation1 [shape = 'u32[144,128]{1,0:T(1,128)}', space=vmem, size = 0x12000, scoped, tag = 'internal scratch']
  %s0 = inlined_call_operand.vmem [shape: bf16[8,512], index: 0, kind: input, shape index: {}]
  %s1 = inlined_call_operand.vmem [shape: bf16[64,8], index: 1, kind: input, shape index: {}]
  %s2 = inlined_call_operand.vmem [shape: f32[64,1], index: 2, kind: input, shape index: {}]
  %s3 = inlined_call_operand.vmem [shape: f32[128,1], index: 3, kind: output, shape index: {0}]
  %s4 = inlined_call_operand.vmem [shape: f32[128,64], index: 4, kind: output, shape index: {1}]
  %5 = xla_tuple %s3, %s4
  %s6 = sld [smem:[#allocation0]]
  $region57: #{pixel_discriminator_forward.2} parent=0
    _
  %s8 = ssub.s32 1, %s6
  %s9 = scalar_select 0, %s8, %s6
  loop: start=0, step=1, limit=6
  $region2: #{pixel_discriminator_forward.2} parent=0 // loop_pre_header
    _
  $region3: #{pixel_discriminator_forward.2} parent=0 // loop_header
    %s11 = sphi 0, %s15
    %p12 = scmp.ge.s32.totalorder %s11, 6
    %s18 = sphi 0, %s30
    %s19 = sphi 0, %s26
    %s20 = sphi 0, %s18
    %s21 = sphi 0, %s19
    %s22 = sphi 0, %s20
    %s23 = sphi 0, %s21
    %s37 = sphi 0, %s39
    %s40 = sphi 0, %s37
    %s41 = sphi 0, %s40
    %s57 = sphi 0, %s41
    %s61 = sphi 0, %s61
    %s63 = sphi 0, %s61
    %s64 = sphi 0, %s63
    %s78 = sphi 0, %s64
    %s82 = sphi 0, %s82
    %s84 = sphi 0, %s82
    %s85 = sphi 0, %s84
    %s99 = sphi 0, %s85
    %s105 = sphi 0, %s107
    %s108 = sphi 0, %s105
    %s109 = sphi 0, %s108
    %s125 = sphi 0, %s109
    %s131 = sphi 0, %s133
    %s134 = sphi 0, %s131
    %s135 = sphi 0, %s134
    %s151 = sphi 0, %s135
  $region4: #{pixel_discriminator_forward.2} parent=0 // loop_header_branch
    %14 = sbr.rel (%p12) target = $region8
  $region5: #{pixel_discriminator_forward.2} parent=0 // loop_body
    %s16 = ssub.s32 %s11, 1
    %s17 = ssub.s32 %s11, 2
    %s24 = sadd.s32 1, %s19
    %p25 = scmp.ge.s32.totalorder %s24, 2
    %s26 = scalar_select %p25, 0, %s24
    %s27 = sadd.s32 1, %s18
    %s28 = scalar_select %p25, %s27, %s18
    %p29 = scmp.ge.s32.totalorder %s28, 2
    %s30 = scalar_select %p29, 0, %s28
    %s31 = smul.u32 %s18, 2
    %s32 = sadd.s32 %s31, %s19
    %s33 = smul.u32 %s30, 2
    %s34 = sadd.s32 %s33, %s26
    %s35 = ssub.s32 %s32, %s34
    %p36 = scmp.eq.s32.totalorder %s35, 0
    %s38 = sadd.s32 %s37, 1
    %s39 = scalar_select %p36, %s37, %s38
    %p42 = pneg %p36
    %p43 = scmp.eq.s32.totalorder %s11, 3
    %p44 = por %p42, %p43
    %p45 = scmp.ne.s32.totalorder %s37, %s40
    %p46 = scmp.eq.s32.totalorder %s11, 0
    %p47 = por %p45, %p46
    %p48 = scmp.ne.s32.totalorder %s37, %s40
    %p49 = scmp.eq.s32.totalorder %s16, 3
    %p50 = por %p48, %p49
    %p51 = scmp.ne.s32.totalorder %s40, %s41
    %p52 = scmp.eq.s32.totalorder %s16, 0
    %p53 = por %p51, %p52
    %p54 = scmp.ne.s32.totalorder %s40, %s41
    %p55 = scmp.eq.s32.totalorder %s17, 3
    %p56 = por %p54, %p55
    %p58 = scmp.ne.s32.totalorder %s41, %s57
    %p59 = scmp.eq.s32.totalorder %s17, 0
    %p60 = por %p58, %p59
    %s62 = sadd.s32 %s61, 1
    %p65 = scmp.eq.s32.totalorder %s11, 3
    %p66 = scmp.ne.s32.totalorder %s61, %s63
    %p67 = scmp.eq.s32.totalorder %s11, 0
    %p68 = por %p66, %p67
    %p69 = scmp.ne.s32.totalorder %s61, %s63
    %p70 = scmp.eq.s32.totalorder %s16, 3
    %p71 = por %p69, %p70
    %p72 = scmp.ne.s32.totalorder %s63, %s64
    %p73 = scmp.eq.s32.totalorder %s16, 0
    %p74 = por %p72, %p73
    %p75 = scmp.ne.s32.totalorder %s63, %s64
    %p76 = scmp.eq.s32.totalorder %s17, 3
    %p77 = por %p75, %p76
    %p79 = scmp.ne.s32.totalorder %s64, %s78
    %p80 = scmp.eq.s32.totalorder %s17, 0
    %p81 = por %p79, %p80
    %s83 = sadd.s32 %s82, 1
    %p86 = scmp.eq.s32.totalorder %s11, 3
    %p87 = scmp.ne.s32.totalorder %s82, %s84
    %p88 = scmp.eq.s32.totalorder %s11, 0
    %p89 = por %p87, %p88
    %p90 = scmp.ne.s32.totalorder %s82, %s84
    %p91 = scmp.eq.s32.totalorder %s16, 3
    %p92 = por %p90, %p91
    %p93 = scmp.ne.s32.totalorder %s84, %s85
    %p94 = scmp.eq.s32.totalorder %s16, 0
    %p95 = por %p93, %p94
    %p96 = scmp.ne.s32.totalorder %s84, %s85
    %p97 = scmp.eq.s32.totalorder %s17, 3
    %p98 = por %p96, %p97
    %p100 = scmp.ne.s32.totalorder %s85, %s99
    %p101 = scmp.eq.s32.totalorder %s17, 0
    %p102 = por %p100, %p101
    %s103 = ssub.s32 %s18, %s30
    %p104 = scmp.eq.s32.totalorder %s103, 0
    %s106 = sadd.s32 %s105, 1
    %s107 = scalar_select %p104, %s105, %s106
    %p110 = pneg %p104
    %p111 = scmp.eq.s32.totalorder %s11, 3
    %p112 = por %p110, %p111
    %p113 = scmp.ne.s32.totalorder %s105, %s108
    %p114 = scmp.eq.s32.totalorder %s11, 0
    %p115 = por %p113, %p114
    %p116 = scmp.ne.s32.totalorder %s105, %s108
    %p117 = scmp.eq.s32.totalorder %s16, 3
    %p118 = por %p116, %p117
    %p119 = scmp.ne.s32.totalorder %s108, %s109
    %p120 = scmp.eq.s32.totalorder %s16, 0
    %p121 = por %p119, %p120
    %p122 = scmp.ne.s32.totalorder %s108, %s109
    %p123 = scmp.eq.s32.totalorder %s17, 3
    %p124 = por %p122, %p123
    %p126 = scmp.ne.s32.totalorder %s109, %s125
    %p127 = scmp.eq.s32.totalorder %s17, 0
    %p128 = por %p126, %p127
    %s129 = ssub.s32 %s18, %s30
    %p130 = scmp.eq.s32.totalorder %s129, 0
    %s132 = sadd.s32 %s131, 1
    %s133 = scalar_select %p130, %s131, %s132
    %p136 = pneg %p130
    %p137 = scmp.eq.s32.totalorder %s11, 3
    %p138 = por %p136, %p137
    %p139 = scmp.ne.s32.totalorder %s131, %s134
    %p140 = scmp.eq.s32.totalorder %s11, 0
    %p141 = por %p139, %p140
    %p142 = scmp.ne.s32.totalorder %s131, %s134
    %p143 = scmp.eq.s32.totalorder %s16, 3
    %p144 = por %p142, %p143
    %p145 = scmp.ne.s32.totalorder %s134, %s135
    %p146 = scmp.eq.s32.totalorder %s16, 0
    %p147 = por %p145, %p146
    %p148 = scmp.ne.s32.totalorder %s134, %s135
    %p149 = scmp.eq.s32.totalorder %s17, 3
    %p150 = por %p148, %p149
    %p152 = scmp.ne.s32.totalorder %s135, %s151
    %p153 = scmp.eq.s32.totalorder %s17, 0
    %p154 = por %p152, %p153
    %p155 = scmp.le.s32.totalorder 1, %s11
    %p156 = scmp.lt.s32.totalorder %s11, 5
    %p157 = pnand %p155, %p156
    %p158 = pneg %p157
    // Predicated region
    $region9: #{pixel_discriminator_forward.2} parent=5 // pred_check
      _
    $region10: #{pixel_discriminator_forward.2} parent=5 // pred_check_branch
      %160 = sbr.rel (%p157) target = $region12
    $region11: #{pixel_discriminator_forward.2} parent=5 // pred_region
      %s161 = ssub.s32 %s11, 1
      // Predicated region
      $region13: #{pixel_discriminator_forward.2} parent=11 // pred_check
        %p162 = pneg %p74
      $region14: #{pixel_discriminator_forward.2} parent=11 // pred_check_branch
        %164 = sbr.rel (%p162) target = $region16
      $region15: #{pixel_discriminator_forward.2} parent=11 // pred_region
        _
      $region16: #{pixel_discriminator_forward.2} parent=11 // pred_fallthru
        _
      // Predicated region
      $region17: #{pixel_discriminator_forward.2} parent=11 // pred_check
        %p165 = pneg %p95
      $region18: #{pixel_discriminator_forward.2} parent=11 // pred_check_branch
        %167 = sbr.rel (%p165) target = $region20
      $region19: #{pixel_discriminator_forward.2} parent=11 // pred_region
        _
      $region20: #{pixel_discriminator_forward.2} parent=11 // pred_fallthru
        _
    $region12: #{pixel_discriminator_forward.2} parent=5 // pred_fallthru
      _
    %p168 = scmp.lt.s32.totalorder %s11, 4
    // Predicated region
    $region21: #{pixel_discriminator_forward.2} parent=5 // pred_check
      %p169 = pneg %p168
    $region22: #{pixel_discriminator_forward.2} parent=5 // pred_check_branch
      %171 = sbr.rel (%p169) target = $region24
    $region23: #{pixel_discriminator_forward.2} parent=5 // pred_region
      // Predicated region
      $region25: #{pixel_discriminator_forward.2} parent=23 // pred_check
        %p172 = pneg %p47
      $region26: #{pixel_discriminator_forward.2} parent=23 // pred_check_branch
        %174 = sbr.rel (%p172) target = $region28
      $region27: #{pixel_discriminator_forward.2} parent=23 // pred_region
        %s175 = smul.u32 %s18, 2
        %s176 = sadd.s32 %s175, %s19
        %p177 = scmp.lt.s32.totalorder %s176, 3
        %s178 = scalar_select %p177, %s176, 3
        %s179 = smul.addr %s178, 4
        %s180 = scalar_lea.vmem %s0, %s179
        %s181 = smul.u32 %s18, 2
        %s182 = sadd.s32 %s181, %s19
      $region28: #{pixel_discriminator_forward.2} parent=23 // pred_fallthru
        _
    $region24: #{pixel_discriminator_forward.2} parent=5 // pred_fallthru
      _
    %p183 = scmp.le.s32.totalorder 1, %s11
    %p184 = scmp.lt.s32.totalorder %s11, 5
    %p185 = pnand %p183, %p184
    %p186 = pneg %p185
    // Predicated region
    $region29: #{pixel_discriminator_forward.2} parent=5 // pred_check
      _
    $region30: #{pixel_discriminator_forward.2} parent=5 // pred_check_branch
      %188 = sbr.rel (%p185) target = $region32
    $region31: #{pixel_discriminator_forward.2} parent=5 // pred_region
      %s189 = ssub.s32 %s11, 1
      %s190 = smul.u32 %s20, 2
      %s191 = sadd.s32 %s190, %s21
      %p192 = scmp.lt.s32.totalorder %s191, 3
      %s193 = scalar_select %p192, %s191, 3
      %s194 = smul.addr %s193, 4
      %s195 = scalar_lea.vmem %s0, %s194
      %p196 = pneg %p53
      %p197 = pneg %p50
      %p198 = pneg %p74
      %p199 = pneg %p71
      %p200 = pneg %p95
      %p201 = pneg %p92
      %p202 = pneg %p121
      %p203 = pneg %p118
      %s204 = smul.u32 8, %s20
      %p205 = scmp.lt.s32.totalorder %s204, 15
      %s206 = scalar_select %p205, %s204, 15
      %s207 = smul.addr %s206, 8
      %s208 = scalar_lea.vmem %s3, %s207
      %p209 = pneg %p147
      %p210 = pneg %p144
      %s211 = smul.u32 8, %s20
      %p212 = scmp.lt.s32.totalorder %s211, 15
      %s213 = scalar_select %p212, %s211, 15
      %s214 = smul.addr %s213, 8
      %s215 = scalar_lea.vmem %s4, %s214
      %s216 = smul.u32 %s20, 2
      %s217 = sadd.s32 %s216, %s21
      %p218 = scmp.lt.s32.totalorder %s217, 3
      %s219 = scalar_select %p218, %s217, 3
      %s220 = smul.addr %s219, 4
      %s221 = scalar_lea.vmem %s0, %s220
      %s222 = smul.u32 %s20, 2
      %s223 = sadd.s32 %s222, %s21
      %s224 = smul.u32 8, %s20
      %p225 = scmp.lt.s32.totalorder %s224, 15
      %s226 = scalar_select %p225, %s224, 15
      %s227 = smul.addr %s226, 8
      %s228 = scalar_lea.vmem %s3, %s227
      %s229 = smul.u32 8, %s20
      %s230 = smul.u32 8, %s20
      %p231 = scmp.lt.s32.totalorder %s230, 15
      %s232 = scalar_select %p231, %s230, 15
      %s233 = smul.addr %s232, 8
      %s234 = scalar_lea.vmem %s4, %s233
      %s235 = smul.u32 8, %s20
      %p237 = scmp.eq.s32.totalorder %s21, 0
      // Predicated region
      $region33: #{pixel_discriminator_forward.2} parent=31 // pred_check
        %p238 = pneg %p237
      $region34: #{pixel_discriminator_forward.2} parent=31 // pred_check_branch
        %240 = sbr.rel (%p238) target = $region36
      $region35: #{pixel_discriminator_forward.2} parent=31 // pred_region
        %vm241 = vcmask 7168
        %242 = vst.msk [vmem:[%s228] sm:$0xff] %vm241, 0.0
        %243 = vst.msk [vmem:[%s228 + $0x8] sm:$0xff] %vm241, 0.0
        %244 = vst.msk [vmem:[%s228 + $0x10] sm:$0xff] %vm241, 0.0
        %245 = vst.msk [vmem:[%s228 + $0x18] sm:$0xff] %vm241, 0.0
        %246 = vst.msk [vmem:[%s228 + $0x20] sm:$0xff] %vm241, 0.0
        %247 = vst.msk [vmem:[%s228 + $0x28] sm:$0xff] %vm241, 0.0
        %248 = vst.msk [vmem:[%s228 + $0x30] sm:$0xff] %vm241, 0.0
        %249 = vst.msk [vmem:[%s228 + $0x38] sm:$0xff] %vm241, 0.0
        %vm250 = vcmask 523264
        %251 = vst.msk [vmem:[%s234] sm:$0xff] %vm250, 0.0
        %252 = vst.msk [vmem:[%s234 + $0x8] sm:$0xff] %vm250, 0.0
        %253 = vst.msk [vmem:[%s234 + $0x10] sm:$0xff] %vm250, 0.0
        %254 = vst.msk [vmem:[%s234 + $0x18] sm:$0xff] %vm250, 0.0
        %255 = vst.msk [vmem:[%s234 + $0x20] sm:$0xff] %vm250, 0.0
        %256 = vst.msk [vmem:[%s234 + $0x28] sm:$0xff] %vm250, 0.0
        %257 = vst.msk [vmem:[%s234 + $0x30] sm:$0xff] %vm250, 0.0
        %258 = vst.msk [vmem:[%s234 + $0x38] sm:$0xff] %vm250, 0.0
      $region36: #{pixel_discriminator_forward.2} parent=31 // pred_fallthru
        _
      %v259 = vld [vmem:[%s1] sm:$0xf]
      %v260 = vld [vmem:[%s1 + $0x4] sm:$0xf]
      %v261 = vld [vmem:[%s1 + $0x8] sm:$0xf]
      %v262 = vld [vmem:[%s1 + $0xc] sm:$0xf]
      %v263 = vld [vmem:[%s1 + $0x10] sm:$0xf]
      %v264 = vld [vmem:[%s1 + $0x14] sm:$0xf]
      %v265 = vld [vmem:[%s1 + $0x18] sm:$0xf]
      %v266 = vld [vmem:[%s1 + $0x1c] sm:$0xf]
      %v267 = vld [vmem:[%s221] sm:$0xf]
      %v268 = vld [vmem:[%s2] sm:$0xff]
      %v269 = vld [vmem:[%s2 + $0x8] sm:$0xff]
      %v270 = vld [vmem:[%s2 + $0x10] sm:$0xff]
      %v271 = vld [vmem:[%s2 + $0x18] sm:$0xff]
      %v272 = vld [vmem:[%s2 + $0x20] sm:$0xff]
      %v273 = vld [vmem:[%s2 + $0x28] sm:$0xff]
      %v274 = vld [vmem:[%s2 + $0x30] sm:$0xff]
      %v275 = vld [vmem:[%s2 + $0x38] sm:$0xff]
      %277 = vset.pattern.permute.xlu0 0
      %278 = vperm.xlu0 %277, %v268
      %v279 = vpop.permute.xlu0 %278
      %282 = vset.pattern.permute.xlu0 0
      %283 = vperm.xlu0 %282, %v269
      %v284 = vpop.permute.xlu0 %283
      %287 = vset.pattern.permute.xlu0 0
      %288 = vperm.xlu0 %287, %v270
      %v289 = vpop.permute.xlu0 %288
      %292 = vset.pattern.permute.xlu0 0
      %293 = vperm.xlu0 %292, %v271
      %v294 = vpop.permute.xlu0 %293
      %297 = vset.pattern.permute.xlu0 0
      %298 = vperm.xlu0 %297, %v272
      %v299 = vpop.permute.xlu0 %298
      %302 = vset.pattern.permute.xlu0 0
      %303 = vperm.xlu0 %302, %v273
      %v304 = vpop.permute.xlu0 %303
      %307 = vset.pattern.permute.xlu0 0
      %308 = vperm.xlu0 %307, %v274
      %v309 = vpop.permute.xlu0 %308
      %312 = vset.pattern.permute.xlu0 0
      %313 = vperm.xlu0 %312, %v275
      %v314 = vpop.permute.xlu0 %313
      %v324 = vunpack.c.l.b16 %v259
      %v325 = vunpack.c.l.b16 %v260
      %v326 = vunpack.c.l.b16 %v261
      %v327 = vunpack.c.l.b16 %v262
      %v328 = vunpack.c.l.b16 %v263
      %v329 = vunpack.c.l.b16 %v264
      %v330 = vunpack.c.l.b16 %v265
      %v331 = vunpack.c.l.b16 %v266
      %v332 = vpack.c.b16 %v325, %v324
      %v333 = vpack.c.b16 %v327, %v326
      %v334 = vpack.c.b16 %v329, %v328
      %v335 = vpack.c.b16 %v331, %v330
      %vm336 = vcmask 64512
      %v338 = vsel %vm336, %v332, 0
      %v341 = vsel %vm336, %v333, 0
      %v344 = vsel %vm336, %v334, 0
      %v347 = vsel %vm336, %v335, 0
      %vm349 = vcmask 1043456
      %v351 = vsel %vm349, %v267, 0
      %353 = vmatprep.subr.bf16.mxu0 0
      %354 = vmatpush1.bf16.msra.mxu0 %v351
      %355 = vmatprep.subr.bf16.mxu0 0
      %356 = vmatpush1.bf16.msra.mxu0 0
      %357 = vmatprep.subr.bf16.mxu0 0
      %358 = vmatpush1.bf16.msra.mxu0 0
      %359 = vmatprep.subr.bf16.mxu0 0
      %360 = vmatpush1.bf16.msra.mxu0 0
      %361 = vmatprep.subr.bf16.mxu0 0
      %362 = vmatpush1.bf16.msra.mxu0 0
      %363 = vmatprep.subr.bf16.mxu0 0
      %364 = vmatpush1.bf16.msra.mxu0 0
      %365 = vmatprep.subr.bf16.mxu0 0
      %366 = vmatpush1.bf16.msra.mxu0 0
      %367 = vmatprep.subr.bf16.mxu0 0
      %368 = vmatpush1.bf16.msra.mxu0 0
      %369 = vmatprep.subr.bf16.mxu0 0
      %370 = vmatpush1.bf16.msra.mxu0 0
      %371 = vmatprep.subr.bf16.mxu0 0
      %372 = vmatpush1.bf16.msra.mxu0 0
      %373 = vmatprep.subr.bf16.mxu0 0
      %374 = vmatpush1.bf16.msra.mxu0 0
      %375 = vmatprep.subr.bf16.mxu0 0
      %376 = vmatpush1.bf16.msra.mxu0 0
      %377 = vmatprep.subr.bf16.mxu0 0
      %378 = vmatpush1.bf16.msra.mxu0 0
      %379 = vmatprep.subr.bf16.mxu0 0
      %380 = vmatpush1.bf16.msra.mxu0 0
      %381 = vmatprep.subr.bf16.mxu0 0
      %382 = vmatpush1.bf16.msra.mxu0 0
      %383 = vmatprep.subr.bf16.mxu0 0
      %384 = vmatpush1.bf16.msra.mxu0 0
      %385 = vmatprep.mubr.bf16.mxu0 0
      %386 = vmatmul.mubr.bf16.gmra.mrb[0].mxu0 %v338
      %v387 = vpop.f32.mrb[0].mxu0
      %v388 = vadd.f32 %v279, %v387
      %v389 = vpop.f32.mrb[0].mxu0
      %v390 = vpop.f32.mrb[0].mxu0
      %v391 = vadd.f32 %v284, %v390
      %v392 = vpop.f32.mrb[0].mxu0
      %393 = vmatprep.mubr.bf16.mxu0 0
      %394 = vmatmul.mubr.bf16.gmra.mrb[0].mxu0 %v341
      %v395 = vpop.f32.mrb[0].mxu0
      %v396 = vadd.f32 %v289, %v395
      %v397 = vpop.f32.mrb[0].mxu0
      %v398 = vpop.f32.mrb[0].mxu0
      %v399 = vadd.f32 %v294, %v398
      %v400 = vpop.f32.mrb[0].mxu0
      %401 = vmatprep.mubr.bf16.mxu0 0
      %402 = vmatmul.mubr.bf16.gmra.mrb[0].mxu0 %v344
      %v403 = vpop.f32.mrb[0].mxu0
      %v404 = vadd.f32 %v299, %v403
      %v405 = vpop.f32.mrb[0].mxu0
      %v406 = vpop.f32.mrb[0].mxu0
      %v407 = vadd.f32 %v304, %v406
      %v408 = vpop.f32.mrb[0].mxu0
      %409 = vmatprep.mubr.bf16.mxu0 0
      %410 = vmatmul.mubr.bf16.gmra.mrb[0].mxu0 %v347
      %v411 = vpop.f32.mrb[0].mxu0
      %v412 = vadd.f32 %v309, %v411
      %v413 = vpop.f32.mrb[0].mxu0
      %v414 = vpop.f32.mrb[0].mxu0
      %v415 = vadd.f32 %v314, %v414
      %v416 = vpop.f32.mrb[0].mxu0
      %417 = vdwg.mxu0
      %vm418 = vcmp.gt.f32.partialorder %v388, 0.0
      %vm419 = vcmp.gt.f32.partialorder %v391, 0.0
      %vm420 = vcmp.gt.f32.partialorder %v396, 0.0
      %vm421 = vcmp.gt.f32.partialorder %v399, 0.0
      %vm422 = vcmp.gt.f32.partialorder %v404, 0.0
      %vm423 = vcmp.gt.f32.partialorder %v407, 0.0
      %vm424 = vcmp.gt.f32.partialorder %v412, 0.0
      %vm425 = vcmp.gt.f32.partialorder %v415, 0.0
      %v426 = vmul.f32 %v388, 0.2
      %v427 = vmul.f32 %v391, 0.2
      %v428 = vmul.f32 %v396, 0.2
      %v429 = vmul.f32 %v399, 0.2
      %v430 = vmul.f32 %v404, 0.2
      %v431 = vmul.f32 %v407, 0.2
      %v432 = vmul.f32 %v412, 0.2
      %v433 = vmul.f32 %v415, 0.2
      %v434 = vsel %vm418, %v388, %v426
      %v435 = vsel %vm419, %v391, %v427
      %v436 = vsel %vm420, %v396, %v428
      %v437 = vsel %vm421, %v399, %v429
      %v438 = vsel %vm422, %v404, %v430
      %v439 = vsel %vm423, %v407, %v431
      %v440 = vsel %vm424, %v412, %v432
      %v441 = vsel %vm425, %v415, %v433
      %v442 = vpack.c.bf16 %v435, %v434
      %v443 = vpack.c.bf16 %v437, %v436
      %v444 = vpack.c.bf16 %v439, %v438
      %v445 = vpack.c.bf16 %v441, %v440
      %v446 = vld [vmem:[%s228] sm:$0xff]
      %v447 = vld [vmem:[%s228 + $0x8] sm:$0xff]
      %v448 = vld [vmem:[%s228 + $0x10] sm:$0xff]
      %v449 = vld [vmem:[%s228 + $0x18] sm:$0xff]
      %v450 = vld [vmem:[%s228 + $0x20] sm:$0xff]
      %v451 = vld [vmem:[%s228 + $0x28] sm:$0xff]
      %v452 = vld [vmem:[%s228 + $0x30] sm:$0xff]
      %v453 = vld [vmem:[%s228 + $0x38] sm:$0xff]
      %454 = vadd.xlane.f32.xlu0 %v434
      %v455 = vpop.xlane.xlu0 %454
      %456 = vadd.xlane.f32.xlu0 %v435
      %v457 = vpop.xlane.xlu0 %456
      %458 = vadd.xlane.f32.xlu0 %v436
      %v459 = vpop.xlane.xlu0 %458
      %460 = vadd.xlane.f32.xlu0 %v437
      %v461 = vpop.xlane.xlu0 %460
      %462 = vadd.xlane.f32.xlu0 %v438
      %v463 = vpop.xlane.xlu0 %462
      %464 = vadd.xlane.f32.xlu0 %v439
      %v465 = vpop.xlane.xlu0 %464
      %466 = vadd.xlane.f32.xlu0 %v440
      %v467 = vpop.xlane.xlu0 %466
      %468 = vadd.xlane.f32.xlu0 %v441
      %v469 = vpop.xlane.xlu0 %468
      %v470 = vadd.f32 %v446, %v455
      %v471 = vadd.f32 %v447, %v457
      %v472 = vadd.f32 %v448, %v459
      %v473 = vadd.f32 %v449, %v461
      %v474 = vadd.f32 %v450, %v463
      %v475 = vadd.f32 %v451, %v465
      %v476 = vadd.f32 %v452, %v467
      %v477 = vadd.f32 %v453, %v469
      %vm478 = vcmask 7168
      %479 = vst.msk [vmem:[%s228] sm:$0xff] %vm478, %v470
      %480 = vst.msk [vmem:[%s228 + $0x8] sm:$0xff] %vm478, %v471
      %481 = vst.msk [vmem:[%s228 + $0x10] sm:$0xff] %vm478, %v472
      %482 = vst.msk [vmem:[%s228 + $0x18] sm:$0xff] %vm478, %v473
      %483 = vst.msk [vmem:[%s228 + $0x20] sm:$0xff] %vm478, %v474
      %484 = vst.msk [vmem:[%s228 + $0x28] sm:$0xff] %vm478, %v475
      %485 = vst.msk [vmem:[%s228 + $0x30] sm:$0xff] %vm478, %v476
      %486 = vst.msk [vmem:[%s228 + $0x38] sm:$0xff] %vm478, %v477
      %v487 = vld [vmem:[%s234] sm:$0xff]
      %v488 = vld [vmem:[%s234 + $0x8] sm:$0xff]
      %v489 = vld [vmem:[%s234 + $0x10] sm:$0xff]
      %v490 = vld [vmem:[%s234 + $0x18] sm:$0xff]
      %v491 = vld [vmem:[%s234 + $0x20] sm:$0xff]
      %v492 = vld [vmem:[%s234 + $0x28] sm:$0xff]
      %v493 = vld [vmem:[%s234 + $0x30] sm:$0xff]
      %v494 = vld [vmem:[%s234 + $0x38] sm:$0xff]
      %495 = vmatprep.subr.bf16.mxu0 0
      %496 = vmatpush1.bf16.xpose.msra.mxu0 %v442
      %497 = vmatprep.subr.bf16.mxu0 0
      %498 = vmatpush1.bf16.xpose.msra.mxu0 %v443
      %499 = vmatprep.subr.bf16.mxu0 0
      %500 = vmatpush1.bf16.xpose.msra.mxu0 %v444
      %501 = vmatprep.subr.bf16.mxu0 0
      %502 = vmatpush1.bf16.xpose.msra.mxu0 %v445
      %503 = vmatprep.subr.bf16.mxu0 0
      %504 = vmatpush1.bf16.xpose.msra.mxu0 0
      %505 = vmatprep.subr.bf16.mxu0 0
      %506 = vmatpush1.bf16.xpose.msra.mxu0 0
      %507 = vmatprep.subr.bf16.mxu0 0
      %508 = vmatpush1.bf16.xpose.msra.mxu0 0
      %509 = vmatprep.subr.bf16.mxu0 0
      %510 = vmatpush1.bf16.xpose.msra.mxu0 0
      %511 = vmatprep.subr.bf16.mxu0 0
      %512 = vmatpush1.bf16.xpose.msra.mxu0 0
      %513 = vmatprep.subr.bf16.mxu0 0
      %514 = vmatpush1.bf16.xpose.msra.mxu0 0
      %515 = vmatprep.subr.bf16.mxu0 0
      %516 = vmatpush1.bf16.xpose.msra.mxu0 0
      %517 = vmatprep.subr.bf16.mxu0 0
      %518 = vmatpush1.bf16.xpose.msra.mxu0 0
      %519 = vmatprep.subr.bf16.mxu0 0
      %520 = vmatpush1.bf16.xpose.msra.mxu0 0
      %521 = vmatprep.subr.bf16.mxu0 0
      %522 = vmatpush1.bf16.xpose.msra.mxu0 0
      %523 = vmatprep.subr.bf16.mxu0 0
      %524 = vmatpush1.bf16.xpose.msra.mxu0 0
      %525 = vmatprep.subr.bf16.mxu0 0
      %526 = vmatpush1.bf16.xpose.msra.mxu0 0
      %527 = vmatprep.mubr.bf16.mxu0 0
      %528 = vmatmul.mubr.bf16.gmra.mrb[0].mxu0 %v442
      %v529 = vpop.f32.mrb[0].mxu0
      %v530 = vadd.f32 0.0, %v529
      %v531 = vpop.f32.mrb[0].mxu0
      %v532 = vpop.f32.mrb[0].mxu0
      %v533 = vadd.f32 0.0, %v532
      %v534 = vpop.f32.mrb[0].mxu0
      %535 = vmatprep.mubr.bf16.mxu0 0
      %536 = vmatmul.mubr.bf16.gmra.mrb[0].mxu0 %v443
      %v537 = vpop.f32.mrb[0].mxu0
      %v538 = vadd.f32 0.0, %v537
      %v539 = vpop.f32.mrb[0].mxu0
      %v540 = vpop.f32.mrb[0].mxu0
      %v541 = vadd.f32 0.0, %v540
      %v542 = vpop.f32.mrb[0].mxu0
      %543 = vmatprep.mubr.bf16.mxu0 0
      %544 = vmatmul.mubr.bf16.gmra.mrb[0].mxu0 %v444
      %v545 = vpop.f32.mrb[0].mxu0
      %v546 = vadd.f32 0.0, %v545
      %v547 = vpop.f32.mrb[0].mxu0
      %v548 = vpop.f32.mrb[0].mxu0
      %v549 = vadd.f32 0.0, %v548
      %v550 = vpop.f32.mrb[0].mxu0
      %551 = vmatprep.mubr.bf16.mxu0 0
      %552 = vmatmul.mubr.bf16.gmra.mrb[0].mxu0 %v445
      %v553 = vpop.f32.mrb[0].mxu0
      %v554 = vadd.f32 0.0, %v553
      %v555 = vpop.f32.mrb[0].mxu0
      %v556 = vpop.f32.mrb[0].mxu0
      %v557 = vadd.f32 0.0, %v556
      %v558 = vpop.f32.mrb[0].mxu0
      %559 = vdwg.mxu0
      %v560 = vadd.f32 %v487, %v530
      %v561 = vadd.f32 %v488, %v533
      %v562 = vadd.f32 %v489, %v538
      %v563 = vadd.f32 %v490, %v541
      %v564 = vadd.f32 %v491, %v546
      %v565 = vadd.f32 %v492, %v549
      %v566 = vadd.f32 %v493, %v554
      %v567 = vadd.f32 %v494, %v557
      %vm568 = vcmask 523264
      %569 = vst.msk [vmem:[%s234] sm:$0xff] %vm568, %v560
      %570 = vst.msk [vmem:[%s234 + $0x8] sm:$0xff] %vm568, %v561
      %571 = vst.msk [vmem:[%s234 + $0x10] sm:$0xff] %vm568, %v562
      %572 = vst.msk [vmem:[%s234 + $0x18] sm:$0xff] %vm568, %v563
      %573 = vst.msk [vmem:[%s234 + $0x20] sm:$0xff] %vm568, %v564
      %574 = vst.msk [vmem:[%s234 + $0x28] sm:$0xff] %vm568, %v565
      %575 = vst.msk [vmem:[%s234 + $0x30] sm:$0xff] %vm568, %v566
      %576 = vst.msk [vmem:[%s234 + $0x38] sm:$0xff] %vm568, %v567
      %s577 = smul.u32 8, %s20
      %p578 = scmp.lt.s32.totalorder %s577, 15
      %s579 = scalar_select %p578, %s577, 15
      %s580 = smul.addr %s579, 8
      %s581 = scalar_lea.vmem %s3, %s580
      %s582 = smul.u32 8, %s20
      %p583 = scmp.lt.s32.totalorder %s582, 15
      %s584 = scalar_select %p583, %s582, 15
      %s585 = smul.addr %s584, 8
      %s586 = scalar_lea.vmem %s4, %s585
      // Predicated region
      $region37: #{pixel_discriminator_forward.2} parent=31 // pred_check
        %p587 = pneg %p118
      $region38: #{pixel_discriminator_forward.2} parent=31 // pred_check_branch
        %589 = sbr.rel (%p587) target = $region40
      $region39: #{pixel_discriminator_forward.2} parent=31 // pred_region
        %s590 = smul.u32 8, %s20
      $region40: #{pixel_discriminator_forward.2} parent=31 // pred_fallthru
        _
      // Predicated region
      $region41: #{pixel_discriminator_forward.2} parent=31 // pred_check
        %p591 = pneg %p144
      $region42: #{pixel_discriminator_forward.2} parent=31 // pred_check_branch
        %593 = sbr.rel (%p591) target = $region44
      $region43: #{pixel_discriminator_forward.2} parent=31 // pred_region
        %s594 = smul.u32 8, %s20
      $region44: #{pixel_discriminator_forward.2} parent=31 // pred_fallthru
        _
    $region32: #{pixel_discriminator_forward.2} parent=5 // pred_fallthru
      _
    %p595 = scmp.le.s32.totalorder 2, %s11
    // Predicated region
    $region45: #{pixel_discriminator_forward.2} parent=5 // pred_check
      %p596 = pneg %p595
    $region46: #{pixel_discriminator_forward.2} parent=5 // pred_check_branch
      %598 = sbr.rel (%p596) target = $region48
    $region47: #{pixel_discriminator_forward.2} parent=5 // pred_region
      %s599 = ssub.s32 %s11, 2
      // Predicated region
      $region49: #{pixel_discriminator_forward.2} parent=47 // pred_check
        %p600 = pneg %p124
      $region50: #{pixel_discriminator_forward.2} parent=47 // pred_check_branch
        %602 = sbr.rel (%p600) target = $region52
      $region51: #{pixel_discriminator_forward.2} parent=47 // pred_region
        %s603 = smul.u32 8, %s22
        %p604 = scmp.lt.s32.totalorder %s603, 15
        %s605 = scalar_select %p604, %s603, 15
        %s606 = smul.addr %s605, 8
        %s607 = scalar_lea.vmem %s3, %s606
      $region52: #{pixel_discriminator_forward.2} parent=47 // pred_fallthru
        _
      // Predicated region
      $region53: #{pixel_discriminator_forward.2} parent=47 // pred_check
        %p608 = pneg %p150
      $region54: #{pixel_discriminator_forward.2} parent=47 // pred_check_branch
        %610 = sbr.rel (%p608) target = $region56
      $region55: #{pixel_discriminator_forward.2} parent=47 // pred_region
        %s611 = smul.u32 8, %s22
        %p612 = scmp.lt.s32.totalorder %s611, 15
        %s613 = scalar_select %p612, %s611, 15
        %s614 = smul.addr %s613, 8
        %s615 = scalar_lea.vmem %s4, %s614
      $region56: #{pixel_discriminator_forward.2} parent=47 // pred_fallthru
        _
    $region48: #{pixel_discriminator_forward.2} parent=5 // pred_fallthru
      _
  $region6: #{pixel_discriminator_forward.2} parent=0 // loop_footer
    %s15 = sadd.s32 1, %s11
  $region7: #{pixel_discriminator_forward.2} parent=0 // loop_footer_branch
    %10 = sbr.rel target = $region3
  $region8: #{pixel_discriminator_forward.2} parent=0 // loop_exit
    _

// kernel: pixel_discriminator_forward.3
$region0: #{pixel_discriminator_forward.3}
  #allocation0 [shape = 'u32[]', space=smem, size = 0x4, offset = 0x4, fixed_abs, tag = 'smem constant byte address 0x4 - core index']
  #allocation1 [shape = 'u32[144,128]{1,0:T(1,128)}', space=vmem, size = 0x12000, scoped, tag = 'internal scratch']
  %s0 = inlined_call_operand.vmem [shape: bf16[8,512], index: 0, kind: input, shape index: {}]
  %s1 = inlined_call_operand.vmem [shape: bf16[64,8], index: 1, kind: input, shape index: {}]
  %s2 = inlined_call_operand.vmem [shape: f32[64,1], index: 2, kind: input, shape index: {}]
  %s3 = inlined_call_operand.vmem [shape: bf16[128,64], index: 3, kind: input, shape index: {}]
  %s4 = inlined_call_operand.vmem [shape: f32[128,1], index: 4, kind: input, shape index: {}]
  %s5 = inlined_call_operand.vmem [shape: f32[128,1], index: 5, kind: input, shape index: {}]
  %s6 = inlined_call_operand.vmem [shape: f32[1,512], index: 6, kind: output, shape index: {}]
  %s7 = sld [smem:[#allocation0]]
  $region57: #{pixel_discriminator_forward.3} parent=0
    _
  %s9 = ssub.s32 1, %s7
  %s10 = scalar_select 0, %s9, %s7
  loop: start=0, step=1, limit=6
  $region2: #{pixel_discriminator_forward.3} parent=0 // loop_pre_header
    _
  $region3: #{pixel_discriminator_forward.3} parent=0 // loop_header
    %s12 = sphi 0, %s16
    %p13 = scmp.ge.s32.totalorder %s12, 6
    %s22 = sphi 0, %s24
    %s25 = sphi 0, %s22
    %s26 = sphi 0, %s25
    %s42 = sphi 0, %s26
    %s46 = sphi 0, %s46
    %s48 = sphi 0, %s46
    %s49 = sphi 0, %s48
    %s63 = sphi 0, %s49
    %s67 = sphi 0, %s67
    %s69 = sphi 0, %s67
    %s70 = sphi 0, %s69
    %s84 = sphi 0, %s70
    %s88 = sphi 0, %s88
    %s90 = sphi 0, %s88
    %s91 = sphi 0, %s90
    %s105 = sphi 0, %s91
    %s109 = sphi 0, %s109
    %s111 = sphi 0, %s109
    %s112 = sphi 0, %s111
    %s126 = sphi 0, %s112
    %s130 = sphi 0, %s130
    %s132 = sphi 0, %s130
    %s133 = sphi 0, %s132
    %s147 = sphi 0, %s133
    %s153 = sphi 0, %s155
    %s156 = sphi 0, %s153
    %s157 = sphi 0, %s156
    %s173 = sphi 0, %s157
  $region4: #{pixel_discriminator_forward.3} parent=0 // loop_header_branch
    %15 = sbr.rel (%p13) target = $region8
  $region5: #{pixel_discriminator_forward.3} parent=0 // loop_body
    %s17 = ssub.s32 %s12, 1
    %s18 = ssub.s32 %s12, 2
    %s19 = sadd.s32 %s12, 1
    %s20 = ssub.s32 %s12, %s19
    %p21 = scmp.eq.s32.totalorder %s20, 0
    %s23 = sadd.s32 %s22, 1
    %s24 = scalar_select %p21, %s22, %s23
    %p27 = pneg %p21
    %p28 = scmp.eq.s32.totalorder %s12, 3
    %p29 = por %p27, %p28
    %p30 = scmp.ne.s32.totalorder %s22, %s25
    %p31 = scmp.eq.s32.totalorder %s12, 0
    %p32 = por %p30, %p31
    %p33 = scmp.ne.s32.totalorder %s22, %s25
    %p34 = scmp.eq.s32.totalorder %s17, 3
    %p35 = por %p33, %p34
    %p36 = scmp.ne.s32.totalorder %s25, %s26
    %p37 = scmp.eq.s32.totalorder %s17, 0
    %p38 = por %p36, %p37
    %p39 = scmp.ne.s32.totalorder %s25, %s26
    %p40 = scmp.eq.s32.totalorder %s18, 3
    %p41 = por %p39, %p40
    %p43 = scmp.ne.s32.totalorder %s26, %s42
    %p44 = scmp.eq.s32.totalorder %s18, 0
    %p45 = por %p43, %p44
    %s47 = sadd.s32 %s46, 1
    %p50 = scmp.eq.s32.totalorder %s12, 3
    %p51 = scmp.ne.s32.totalorder %s46, %s48
    %p52 = scmp.eq.s32.totalorder %s12, 0
    %p53 = por %p51, %p52
    %p54 = scmp.ne.s32.totalorder %s46, %s48
    %p55 = scmp.eq.s32.totalorder %s17, 3
    %p56 = por %p54, %p55
    %p57 = scmp.ne.s32.totalorder %s48, %s49
    %p58 = scmp.eq.s32.totalorder %s17, 0
    %p59 = por %p57, %p58
    %p60 = scmp.ne.s32.totalorder %s48, %s49
    %p61 = scmp.eq.s32.totalorder %s18, 3
    %p62 = por %p60, %p61
    %p64 = scmp.ne.s32.totalorder %s49, %s63
    %p65 = scmp.eq.s32.totalorder %s18, 0
    %p66 = por %p64, %p65
    %s68 = sadd.s32 %s67, 1
    %p71 = scmp.eq.s32.totalorder %s12, 3
    %p72 = scmp.ne.s32.totalorder %s67, %s69
    %p73 = scmp.eq.s32.totalorder %s12, 0
    %p74 = por %p72, %p73
    %p75 = scmp.ne.s32.totalorder %s67, %s69
    %p76 = scmp.eq.s32.totalorder %s17, 3
    %p77 = por %p75, %p76
    %p78 = scmp.ne.s32.totalorder %s69, %s70
    %p79 = scmp.eq.s32.totalorder %s17, 0
    %p80 = por %p78, %p79
    %p81 = scmp.ne.s32.totalorder %s69, %s70
    %p82 = scmp.eq.s32.totalorder %s18, 3
    %p83 = por %p81, %p82
    %p85 = scmp.ne.s32.totalorder %s70, %s84
    %p86 = scmp.eq.s32.totalorder %s18, 0
    %p87 = por %p85, %p86
    %s89 = sadd.s32 %s88, 1
    %p92 = scmp.eq.s32.totalorder %s12, 3
    %p93 = scmp.ne.s32.totalorder %s88, %s90
    %p94 = scmp.eq.s32.totalorder %s12, 0
    %p95 = por %p93, %p94
    %p96 = scmp.ne.s32.totalorder %s88, %s90
    %p97 = scmp.eq.s32.totalorder %s17, 3
    %p98 = por %p96, %p97
    %p99 = scmp.ne.s32.totalorder %s90, %s91
    %p100 = scmp.eq.s32.totalorder %s17, 0
    %p101 = por %p99, %p100
    %p102 = scmp.ne.s32.totalorder %s90, %s91
    %p103 = scmp.eq.s32.totalorder %s18, 3
    %p104 = por %p102, %p103
    %p106 = scmp.ne.s32.totalorder %s91, %s105
    %p107 = scmp.eq.s32.totalorder %s18, 0
    %p108 = por %p106, %p107
    %s110 = sadd.s32 %s109, 1
    %p113 = scmp.eq.s32.totalorder %s12, 3
    %p114 = scmp.ne.s32.totalorder %s109, %s111
    %p115 = scmp.eq.s32.totalorder %s12, 0
    %p116 = por %p114, %p115
    %p117 = scmp.ne.s32.totalorder %s109, %s111
    %p118 = scmp.eq.s32.totalorder %s17, 3
    %p119 = por %p117, %p118
    %p120 = scmp.ne.s32.totalorder %s111, %s112
    %p121 = scmp.eq.s32.totalorder %s17, 0
    %p122 = por %p120, %p121
    %p123 = scmp.ne.s32.totalorder %s111, %s112
    %p124 = scmp.eq.s32.totalorder %s18, 3
    %p125 = por %p123, %p124
    %p127 = scmp.ne.s32.totalorder %s112, %s126
    %p128 = scmp.eq.s32.totalorder %s18, 0
    %p129 = por %p127, %p128
    %s131 = sadd.s32 %s130, 1
    %p134 = scmp.eq.s32.totalorder %s12, 3
    %p135 = scmp.ne.s32.totalorder %s130, %s132
    %p136 = scmp.eq.s32.totalorder %s12, 0
    %p137 = por %p135, %p136
    %p138 = scmp.ne.s32.totalorder %s130, %s132
    %p139 = scmp.eq.s32.totalorder %s17, 3
    %p140 = por %p138, %p139
    %p141 = scmp.ne.s32.totalorder %s132, %s133
    %p142 = scmp.eq.s32.totalorder %s17, 0
    %p143 = por %p141, %p142
    %p144 = scmp.ne.s32.totalorder %s132, %s133
    %p145 = scmp.eq.s32.totalorder %s18, 3
    %p146 = por %p144, %p145
    %p148 = scmp.ne.s32.totalorder %s133, %s147
    %p149 = scmp.eq.s32.totalorder %s18, 0
    %p150 = por %p148, %p149
    %s151 = ssub.s32 %s12, %s19
    %p152 = scmp.eq.s32.totalorder %s151, 0
    %s154 = sadd.s32 %s153, 1
    %s155 = scalar_select %p152, %s153, %s154
    %p158 = pneg %p152
    %p159 = scmp.eq.s32.totalorder %s12, 3
    %p160 = por %p158, %p159
    %p161 = scmp.ne.s32.totalorder %s153, %s156
    %p162 = scmp.eq.s32.totalorder %s12, 0
    %p163 = por %p161, %p162
    %p164 = scmp.ne.s32.totalorder %s153, %s156
    %p165 = scmp.eq.s32.totalorder %s17, 3
    %p166 = por %p164, %p165
    %p167 = scmp.ne.s32.totalorder %s156, %s157
    %p168 = scmp.eq.s32.totalorder %s17, 0
    %p169 = por %p167, %p168
    %p170 = scmp.ne.s32.totalorder %s156, %s157
    %p171 = scmp.eq.s32.totalorder %s18, 3
    %p172 = por %p170, %p171
    %p174 = scmp.ne.s32.totalorder %s157, %s173
    %p175 = scmp.eq.s32.totalorder %s18, 0
    %p176 = por %p174, %p175
    %p177 = scmp.le.s32.totalorder 1, %s12
    %p178 = scmp.lt.s32.totalorder %s12, 5
    %p179 = pnand %p177, %p178
    %p180 = pneg %p179
    // Predicated region
    $region9: #{pixel_discriminator_forward.3} parent=5 // pred_check
      _
    $region10: #{pixel_discriminator_forward.3} parent=5 // pred_check_branch
      %182 = sbr.rel (%p179) target = $region12
    $region11: #{pixel_discriminator_forward.3} parent=5 // pred_region
      %s183 = ssub.s32 %s12, 1
      // Predicated region
      $region13: #{pixel_discriminator_forward.3} parent=11 // pred_check
        %p184 = pneg %p59
      $region14: #{pixel_discriminator_forward.3} parent=11 // pred_check_branch
        %186 = sbr.rel (%p184) target = $region16
      $region15: #{pixel_discriminator_forward.3} parent=11 // pred_region
        _
      $region16: #{pixel_discriminator_forward.3} parent=11 // pred_fallthru
        _
      // Predicated region
      $region17: #{pixel_discriminator_forward.3} parent=11 // pred_check
        %p187 = pneg %p80
      $region18: #{pixel_discriminator_forward.3} parent=11 // pred_check_branch
        %189 = sbr.rel (%p187) target = $region20
      $region19: #{pixel_discriminator_forward.3} parent=11 // pred_region
        _
      $region20: #{pixel_discriminator_forward.3} parent=11 // pred_fallthru
        _
      // Predicated region
      $region21: #{pixel_discriminator_forward.3} parent=11 // pred_check
        %p190 = pneg %p101
      $region22: #{pixel_discriminator_forward.3} parent=11 // pred_check_branch
        %192 = sbr.rel (%p190) target = $region24
      $region23: #{pixel_discriminator_forward.3} parent=11 // pred_region
        _
      $region24: #{pixel_discriminator_forward.3} parent=11 // pred_fallthru
        _
      // Predicated region
      $region25: #{pixel_discriminator_forward.3} parent=11 // pred_check
        %p193 = pneg %p122
      $region26: #{pixel_discriminator_forward.3} parent=11 // pred_check_branch
        %195 = sbr.rel (%p193) target = $region28
      $region27: #{pixel_discriminator_forward.3} parent=11 // pred_region
        _
      $region28: #{pixel_discriminator_forward.3} parent=11 // pred_fallthru
        _
      // Predicated region
      $region29: #{pixel_discriminator_forward.3} parent=11 // pred_check
        %p196 = pneg %p143
      $region30: #{pixel_discriminator_forward.3} parent=11 // pred_check_branch
        %198 = sbr.rel (%p196) target = $region32
      $region31: #{pixel_discriminator_forward.3} parent=11 // pred_region
        _
      $region32: #{pixel_discriminator_forward.3} parent=11 // pred_fallthru
        _
    $region12: #{pixel_discriminator_forward.3} parent=5 // pred_fallthru
      _
    %p199 = scmp.lt.s32.totalorder %s12, 4
    // Predicated region
    $region33: #{pixel_discriminator_forward.3} parent=5 // pred_check
      %p200 = pneg %p199
    $region34: #{pixel_discriminator_forward.3} parent=5 // pred_check_branch
      %202 = sbr.rel (%p200) target = $region36
    $region35: #{pixel_discriminator_forward.3} parent=5 // pred_region
      // Predicated region
      $region37: #{pixel_discriminator_forward.3} parent=35 // pred_check
        %p203 = pneg %p32
      $region38: #{pixel_discriminator_forward.3} parent=35 // pred_check_branch
        %205 = sbr.rel (%p203) target = $region40
      $region39: #{pixel_discriminator_forward.3} parent=35 // pred_region
        %p206 = scmp.lt.s32.totalorder %s12, 3
        %s207 = scalar_select %p206, %s12, 3
        %s208 = smul.addr %s207, 4
        %s209 = scalar_lea.vmem %s0, %s208
      $region40: #{pixel_discriminator_forward.3} parent=35 // pred_fallthru
        _
    $region36: #{pixel_discriminator_forward.3} parent=5 // pred_fallthru
      _
    %p210 = scmp.le.s32.totalorder 1, %s12
    %p211 = scmp.lt.s32.totalorder %s12, 5
    %p212 = pnand %p210, %p211
    %p213 = pneg %p212
    // Predicated region
    $region41: #{pixel_discriminator_forward.3} parent=5 // pred_check
      _
    $region42: #{pixel_discriminator_forward.3} parent=5 // pred_check_branch
      %215 = sbr.rel (%p212) target = $region44
    $region43: #{pixel_discriminator_forward.3} parent=5 // pred_region
      %s216 = ssub.s32 %s12, 1
      %p217 = scmp.lt.s32.totalorder %s17, 3
      %s218 = scalar_select %p217, %s17, 3
      %s219 = smul.addr %s218, 4
      %s220 = scalar_lea.vmem %s0, %s219
      %p221 = pneg %p38
      %p222 = pneg %p35
      %p223 = pneg %p59
      %p224 = pneg %p56
      %p225 = pneg %p80
      %p226 = pneg %p77
      %p227 = pneg %p101
      %p228 = pneg %p98
      %p229 = pneg %p122
      %p230 = pneg %p119
      %p231 = pneg %p143
      %p232 = pneg %p140
      %p233 = pneg %p169
      %p234 = pneg %p166
      %p235 = scmp.lt.s32.totalorder %s17, 3
      %s236 = scalar_select %p235, %s17, 3
      %s237 = scalar_lea.vmem %s6, %s236
      %p238 = scmp.lt.s32.totalorder %s17, 3
      %s239 = scalar_select %p238, %s17, 3
      %s240 = smul.addr %s239, 4
      %s241 = scalar_lea.vmem %s0, %s240
      %p242 = scmp.lt.s32.totalorder %s17, 3
      %s243 = scalar_select %p242, %s17, 3
      %s244 = scalar_lea.vmem %s6, %s243
      %v246 = vld [vmem:[%s1] sm:$0xf]
      %v247 = vld [vmem:[%s1 + $0x4] sm:$0xf]
      %v248 = vld [vmem:[%s1 + $0x8] sm:$0xf]
      %v249 = vld [vmem:[%s1 + $0xc] sm:$0xf]
      %v250 = vld [vmem:[%s1 + $0x10] sm:$0xf]
      %v251 = vld [vmem:[%s1 + $0x14] sm:$0xf]
      %v252 = vld [vmem:[%s1 + $0x18] sm:$0xf]
      %v253 = vld [vmem:[%s1 + $0x1c] sm:$0xf]
      %v254 = vld [vmem:[%s241] sm:$0xf]
      %v255 = vld [vmem:[%s2] sm:$0xff]
      %v256 = vld [vmem:[%s2 + $0x8] sm:$0xff]
      %v257 = vld [vmem:[%s2 + $0x10] sm:$0xff]
      %v258 = vld [vmem:[%s2 + $0x18] sm:$0xff]
      %v259 = vld [vmem:[%s2 + $0x20] sm:$0xff]
      %v260 = vld [vmem:[%s2 + $0x28] sm:$0xff]
      %v261 = vld [vmem:[%s2 + $0x30] sm:$0xff]
      %v262 = vld [vmem:[%s2 + $0x38] sm:$0xff]
      %264 = vset.pattern.permute.xlu0 0
      %265 = vperm.xlu0 %264, %v255
      %v266 = vpop.permute.xlu0 %265
      %269 = vset.pattern.permute.xlu0 0
      %270 = vperm.xlu0 %269, %v256
      %v271 = vpop.permute.xlu0 %270
      %274 = vset.pattern.permute.xlu0 0
      %275 = vperm.xlu0 %274, %v257
      %v276 = vpop.permute.xlu0 %275
      %279 = vset.pattern.permute.xlu0 0
      %280 = vperm.xlu0 %279, %v258
      %v281 = vpop.permute.xlu0 %280
      %284 = vset.pattern.permute.xlu0 0
      %285 = vperm.xlu0 %284, %v259
      %v286 = vpop.permute.xlu0 %285
      %289 = vset.pattern.permute.xlu0 0
      %290 = vperm.xlu0 %289, %v260
      %v291 = vpop.permute.xlu0 %290
      %294 = vset.pattern.permute.xlu0 0
      %295 = vperm.xlu0 %294, %v261
      %v296 = vpop.permute.xlu0 %295
      %299 = vset.pattern.permute.xlu0 0
      %300 = vperm.xlu0 %299, %v262
      %v301 = vpop.permute.xlu0 %300
      %v311 = vunpack.c.l.b16 %v246
      %v312 = vunpack.c.l.b16 %v247
      %v313 = vunpack.c.l.b16 %v248
      %v314 = vunpack.c.l.b16 %v249
      %v315 = vunpack.c.l.b16 %v250
      %v316 = vunpack.c.l.b16 %v251
      %v317 = vunpack.c.l.b16 %v252
      %v318 = vunpack.c.l.b16 %v253
      %v319 = vpack.c.b16 %v312, %v311
      %v320 = vpack.c.b16 %v314, %v313
      %v321 = vpack.c.b16 %v316, %v315
      %v322 = vpack.c.b16 %v318, %v317
      %vm323 = vcmask 64512
      %v325 = vsel %vm323, %v319, 0
      %v328 = vsel %vm323, %v320, 0
      %v331 = vsel %vm323, %v321, 0
      %v334 = vsel %vm323, %v322, 0
      %vm336 = vcmask 1043456
      %v338 = vsel %vm336, %v254, 0
      %340 = vmatprep.subr.bf16.mxu0 0
      %341 = vmatpush1.bf16.msra.mxu0 %v338
      %342 = vmatprep.subr.bf16.mxu0 0
      %343 = vmatpush1.bf16.msra.mxu0 0
      %344 = vmatprep.subr.bf16.mxu0 0
      %345 = vmatpush1.bf16.msra.mxu0 0
      %346 = vmatprep.subr.bf16.mxu0 0
      %347 = vmatpush1.bf16.msra.mxu0 0
      %348 = vmatprep.subr.bf16.mxu0 0
      %349 = vmatpush1.bf16.msra.mxu0 0
      %350 = vmatprep.subr.bf16.mxu0 0
      %351 = vmatpush1.bf16.msra.mxu0 0
      %352 = vmatprep.subr.bf16.mxu0 0
      %353 = vmatpush1.bf16.msra.mxu0 0
      %354 = vmatprep.subr.bf16.mxu0 0
      %355 = vmatpush1.bf16.msra.mxu0 0
      %356 = vmatprep.subr.bf16.mxu0 0
      %357 = vmatpush1.bf16.msra.mxu0 0
      %358 = vmatprep.subr.bf16.mxu0 0
      %359 = vmatpush1.bf16.msra.mxu0 0
      %360 = vmatprep.subr.bf16.mxu0 0
      %361 = vmatpush1.bf16.msra.mxu0 0
      %362 = vmatprep.subr.bf16.mxu0 0
      %363 = vmatpush1.bf16.msra.mxu0 0
      %364 = vmatprep.subr.bf16.mxu0 0
      %365 = vmatpush1.bf16.msra.mxu0 0
      %366 = vmatprep.subr.bf16.mxu0 0
      %367 = vmatpush1.bf16.msra.mxu0 0
      %368 = vmatprep.subr.bf16.mxu0 0
      %369 = vmatpush1.bf16.msra.mxu0 0
      %370 = vmatprep.subr.bf16.mxu0 0
      %371 = vmatpush1.bf16.msra.mxu0 0
      %372 = vmatprep.mubr.bf16.mxu0 0
      %373 = vmatmul.mubr.bf16.gmra.mrb[0].mxu0 %v325
      %v374 = vpop.f32.mrb[0].mxu0
      %v375 = vadd.f32 %v266, %v374
      %v376 = vpop.f32.mrb[0].mxu0
      %v377 = vpop.f32.mrb[0].mxu0
      %v378 = vadd.f32 %v271, %v377
      %v379 = vpop.f32.mrb[0].mxu0
      %380 = vmatprep.mubr.bf16.mxu0 0
      %381 = vmatmul.mubr.bf16.gmra.mrb[0].mxu0 %v328
      %v382 = vpop.f32.mrb[0].mxu0
      %v383 = vadd.f32 %v276, %v382
      %v384 = vpop.f32.mrb[0].mxu0
      %v385 = vpop.f32.mrb[0].mxu0
      %v386 = vadd.f32 %v281, %v385
      %v387 = vpop.f32.mrb[0].mxu0
      %388 = vmatprep.mubr.bf16.mxu0 0
      %389 = vmatmul.mubr.bf16.gmra.mrb[0].mxu0 %v331
      %v390 = vpop.f32.mrb[0].mxu0
      %v391 = vadd.f32 %v286, %v390
      %v392 = vpop.f32.mrb[0].mxu0
      %v393 = vpop.f32.mrb[0].mxu0
      %v394 = vadd.f32 %v291, %v393
      %v395 = vpop.f32.mrb[0].mxu0
      %396 = vmatprep.mubr.bf16.mxu0 0
      %397 = vmatmul.mubr.bf16.gmra.mrb[0].mxu0 %v334
      %v398 = vpop.f32.mrb[0].mxu0
      %v399 = vadd.f32 %v296, %v398
      %v400 = vpop.f32.mrb[0].mxu0
      %v401 = vpop.f32.mrb[0].mxu0
      %v402 = vadd.f32 %v301, %v401
      %v403 = vpop.f32.mrb[0].mxu0
      %404 = vdwg.mxu0
      %vm405 = vcmp.gt.f32.partialorder %v375, 0.0
      %vm406 = vcmp.gt.f32.partialorder %v378, 0.0
      %vm407 = vcmp.gt.f32.partialorder %v383, 0.0
      %vm408 = vcmp.gt.f32.partialorder %v386, 0.0
      %vm409 = vcmp.gt.f32.partialorder %v391, 0.0
      %vm410 = vcmp.gt.f32.partialorder %v394, 0.0
      %vm411 = vcmp.gt.f32.partialorder %v399, 0.0
      %vm412 = vcmp.gt.f32.partialorder %v402, 0.0
      %v413 = vmul.f32 %v375, 0.2
      %v414 = vmul.f32 %v378, 0.2
      %v415 = vmul.f32 %v383, 0.2
      %v416 = vmul.f32 %v386, 0.2
      %v417 = vmul.f32 %v391, 0.2
      %v418 = vmul.f32 %v394, 0.2
      %v419 = vmul.f32 %v399, 0.2
      %v420 = vmul.f32 %v402, 0.2
      %v421 = vsel %vm405, %v375, %v413
      %v422 = vsel %vm406, %v378, %v414
      %v423 = vsel %vm407, %v383, %v415
      %v424 = vsel %vm408, %v386, %v416
      %v425 = vsel %vm409, %v391, %v417
      %v426 = vsel %vm410, %v394, %v418
      %v427 = vsel %vm411, %v399, %v419
      %v428 = vsel %vm412, %v402, %v420
      %v429 = vld [vmem:[%s3] sm:$0xf]
      %v430 = vld [vmem:[%s3 + $0x4] sm:$0xf]
      %v431 = vld [vmem:[%s3 + $0x8] sm:$0xf]
      %v432 = vld [vmem:[%s3 + $0xc] sm:$0xf]
      %v433 = vld [vmem:[%s3 + $0x10] sm:$0xf]
      %v434 = vld [vmem:[%s3 + $0x14] sm:$0xf]
      %v435 = vld [vmem:[%s3 + $0x18] sm:$0xf]
      %v436 = vld [vmem:[%s3 + $0x1c] sm:$0xf]
      %v437 = vld [vmem:[%s3 + $0x20] sm:$0xf]
      %v438 = vld [vmem:[%s3 + $0x24] sm:$0xf]
      %v439 = vld [vmem:[%s3 + $0x28] sm:$0xf]
      %v440 = vld [vmem:[%s3 + $0x2c] sm:$0xf]
      %v441 = vld [vmem:[%s3 + $0x30] sm:$0xf]
      %v442 = vld [vmem:[%s3 + $0x34] sm:$0xf]
      %v443 = vld [vmem:[%s3 + $0x38] sm:$0xf]
      %v444 = vld [vmem:[%s3 + $0x3c] sm:$0xf]
      %v445 = vpack.c.bf16 %v422, %v421
      %v446 = vpack.c.bf16 %v424, %v423
      %v447 = vpack.c.bf16 %v426, %v425
      %v448 = vpack.c.bf16 %v428, %v427
      %v449 = vld [vmem:[%s4] sm:$0xff]
      %v450 = vld [vmem:[%s4 + $0x8] sm:$0xff]
      %v451 = vld [vmem:[%s4 + $0x10] sm:$0xff]
      %v452 = vld [vmem:[%s4 + $0x18] sm:$0xff]
      %v453 = vld [vmem:[%s4 + $0x20] sm:$0xff]
      %v454 = vld [vmem:[%s4 + $0x28] sm:$0xff]
      %v455 = vld [vmem:[%s4 + $0x30] sm:$0xff]
      %v456 = vld [vmem:[%s4 + $0x38] sm:$0xff]
      %v457 = vld [vmem:[%s4 + $0x40] sm:$0xff]
      %v458 = vld [vmem:[%s4 + $0x48] sm:$0xff]
      %v459 = vld [vmem:[%s4 + $0x50] sm:$0xff]
      %v460 = vld [vmem:[%s4 + $0x58] sm:$0xff]
      %v461 = vld [vmem:[%s4 + $0x60] sm:$0xff]
      %v462 = vld [vmem:[%s4 + $0x68] sm:$0xff]
      %v463 = vld [vmem:[%s4 + $0x70] sm:$0xff]
      %v464 = vld [vmem:[%s4 + $0x78] sm:$0xff]
      %466 = vset.pattern.permute.xlu0 0
      %467 = vperm.xlu0 %466, %v449
      %v468 = vpop.permute.xlu0 %467
      %471 = vset.pattern.permute.xlu0 0
      %472 = vperm.xlu0 %471, %v450
      %v473 = vpop.permute.xlu0 %472
      %476 = vset.pattern.permute.xlu0 0
      %477 = vperm.xlu0 %476, %v451
      %v478 = vpop.permute.xlu0 %477
      %481 = vset.pattern.permute.xlu0 0
      %482 = vperm.xlu0 %481, %v452
      %v483 = vpop.permute.xlu0 %482
      %486 = vset.pattern.permute.xlu0 0
      %487 = vperm.xlu0 %486, %v453
      %v488 = vpop.permute.xlu0 %487
      %491 = vset.pattern.permute.xlu0 0
      %492 = vperm.xlu0 %491, %v454
      %v493 = vpop.permute.xlu0 %492
      %496 = vset.pattern.permute.xlu0 0
      %497 = vperm.xlu0 %496, %v455
      %v498 = vpop.permute.xlu0 %497
      %501 = vset.pattern.permute.xlu0 0
      %502 = vperm.xlu0 %501, %v456
      %v503 = vpop.permute.xlu0 %502
      %506 = vset.pattern.permute.xlu0 0
      %507 = vperm.xlu0 %506, %v457
      %v508 = vpop.permute.xlu0 %507
      %511 = vset.pattern.permute.xlu0 0
      %512 = vperm.xlu0 %511, %v458
      %v513 = vpop.permute.xlu0 %512
      %516 = vset.pattern.permute.xlu0 0
      %517 = vperm.xlu0 %516, %v459
      %v518 = vpop.permute.xlu0 %517
      %521 = vset.pattern.permute.xlu0 0
      %522 = vperm.xlu0 %521, %v460
      %v523 = vpop.permute.xlu0 %522
      %526 = vset.pattern.permute.xlu0 0
      %527 = vperm.xlu0 %526, %v461
      %v528 = vpop.permute.xlu0 %527
      %531 = vset.pattern.permute.xlu0 0
      %532 = vperm.xlu0 %531, %v462
      %v533 = vpop.permute.xlu0 %532
      %536 = vset.pattern.permute.xlu0 0
      %537 = vperm.xlu0 %536, %v463
      %v538 = vpop.permute.xlu0 %537
      %541 = vset.pattern.permute.xlu0 0
      %542 = vperm.xlu0 %541, %v464
      %v543 = vpop.permute.xlu0 %542
      %v561 = vunpack.c.l.b16 %v429
      %v562 = vunpack.c.l.b16 %v430
      %v563 = vunpack.c.l.b16 %v431
      %v564 = vunpack.c.l.b16 %v432
      %v565 = vunpack.c.l.b16 %v433
      %v566 = vunpack.c.l.b16 %v434
      %v567 = vunpack.c.l.b16 %v435
      %v568 = vunpack.c.l.b16 %v436
      %v569 = vunpack.c.l.b16 %v437
      %v570 = vunpack.c.l.b16 %v438
      %v571 = vunpack.c.l.b16 %v439
      %v572 = vunpack.c.l.b16 %v440
      %v573 = vunpack.c.l.b16 %v441
      %v574 = vunpack.c.l.b16 %v442
      %v575 = vunpack.c.l.b16 %v443
      %v576 = vunpack.c.l.b16 %v444
      %v577 = vpack.c.b16 %v562, %v561
      %v578 = vpack.c.b16 %v564, %v563
      %v579 = vpack.c.b16 %v566, %v565
      %v580 = vpack.c.b16 %v568, %v567
      %v581 = vpack.c.b16 %v570, %v569
      %v582 = vpack.c.b16 %v572, %v571
      %v583 = vpack.c.b16 %v574, %v573
      %v584 = vpack.c.b16 %v576, %v575
      %vm585 = vcmask 523264
      %v587 = vsel %vm585, %v577, 0
      %v590 = vsel %vm585, %v578, 0
      %v593 = vsel %vm585, %v579, 0
      %v596 = vsel %vm585, %v580, 0
      %v599 = vsel %vm585, %v581, 0
      %v602 = vsel %vm585, %v582, 0
      %v605 = vsel %vm585, %v583, 0
      %v608 = vsel %vm585, %v584, 0
      %610 = vmatprep.subr.bf16.mxu0 0
      %611 = vmatpush1.bf16.msra.mxu0 %v445
      %612 = vmatprep.subr.bf16.mxu0 0
      %613 = vmatpush1.bf16.msra.mxu0 %v446
      %614 = vmatprep.subr.bf16.mxu0 0
      %615 = vmatpush1.bf16.msra.mxu0 %v447
      %616 = vmatprep.subr.bf16.mxu0 0
      %617 = vmatpush1.bf16.msra.mxu0 %v448
      %618 = vmatprep.subr.bf16.mxu0 0
      %619 = vmatpush1.bf16.msra.mxu0 0
      %620 = vmatprep.subr.bf16.mxu0 0
      %621 = vmatpush1.bf16.msra.mxu0 0
      %622 = vmatprep.subr.bf16.mxu0 0
      %623 = vmatpush1.bf16.msra.mxu0 0
      %624 = vmatprep.subr.bf16.mxu0 0
      %625 = vmatpush1.bf16.msra.mxu0 0
      %626 = vmatprep.subr.bf16.mxu0 0
      %627 = vmatpush1.bf16.msra.mxu0 0
      %628 = vmatprep.subr.bf16.mxu0 0
      %629 = vmatpush1.bf16.msra.mxu0 0
      %630 = vmatprep.subr.bf16.mxu0 0
      %631 = vmatpush1.bf16.msra.mxu0 0
      %632 = vmatprep.subr.bf16.mxu0 0
      %633 = vmatpush1.bf16.msra.mxu0 0
      %634 = vmatprep.subr.bf16.mxu0 0
      %635 = vmatpush1.bf16.msra.mxu0 0
      %636 = vmatprep.subr.bf16.mxu0 0
      %637 = vmatpush1.bf16.msra.mxu0 0
      %638 = vmatprep.subr.bf16.mxu0 0
      %639 = vmatpush1.bf16.msra.mxu0 0
      %640 = vmatprep.subr.bf16.mxu0 0
      %641 = vmatpush1.bf16.msra.mxu0 0
      %642 = vmatprep.mubr.bf16.mxu0 0
      %643 = vmatmul.mubr.bf16.gmra.mrb[0].mxu0 %v587
      %v644 = vpop.f32.mrb[0].mxu0
      %v645 = vadd.f32 %v468, %v644
      %v646 = vpop.f32.mrb[0].mxu0
      %v647 = vpop.f32.mrb[0].mxu0
      %v648 = vadd.f32 %v473, %v647
      %v649 = vpop.f32.mrb[0].mxu0
      %650 = vmatprep.mubr.bf16.mxu0 0
      %651 = vmatmul.mubr.bf16.gmra.mrb[0].mxu0 %v590
      %v652 = vpop.f32.mrb[0].mxu0
      %v653 = vadd.f32 %v478, %v652
      %v654 = vpop.f32.mrb[0].mxu0
      %v655 = vpop.f32.mrb[0].mxu0
      %v656 = vadd.f32 %v483, %v655
      %v657 = vpop.f32.mrb[0].mxu0
      %658 = vmatprep.mubr.bf16.mxu0 0
      %659 = vmatmul.mubr.bf16.gmra.mrb[0].mxu0 %v593
      %v660 = vpop.f32.mrb[0].mxu0
      %v661 = vadd.f32 %v488, %v660
      %v662 = vpop.f32.mrb[0].mxu0
      %v663 = vpop.f32.mrb[0].mxu0
      %v664 = vadd.f32 %v493, %v663
      %v665 = vpop.f32.mrb[0].mxu0
      %666 = vmatprep.mubr.bf16.mxu0 0
      %667 = vmatmul.mubr.bf16.gmra.mrb[0].mxu0 %v596
      %v668 = vpop.f32.mrb[0].mxu0
      %v669 = vadd.f32 %v498, %v668
      %v670 = vpop.f32.mrb[0].mxu0
      %v671 = vpop.f32.mrb[0].mxu0
      %v672 = vadd.f32 %v503, %v671
      %v673 = vpop.f32.mrb[0].mxu0
      %674 = vmatprep.mubr.bf16.mxu0 0
      %675 = vmatmul.mubr.bf16.gmra.mrb[0].mxu0 %v599
      %v676 = vpop.f32.mrb[0].mxu0
      %v677 = vadd.f32 %v508, %v676
      %v678 = vpop.f32.mrb[0].mxu0
      %v679 = vpop.f32.mrb[0].mxu0
      %v680 = vadd.f32 %v513, %v679
      %v681 = vpop.f32.mrb[0].mxu0
      %682 = vmatprep.mubr.bf16.mxu0 0
      %683 = vmatmul.mubr.bf16.gmra.mrb[0].mxu0 %v602
      %v684 = vpop.f32.mrb[0].mxu0
      %v685 = vadd.f32 %v518, %v684
      %v686 = vpop.f32.mrb[0].mxu0
      %v687 = vpop.f32.mrb[0].mxu0
      %v688 = vadd.f32 %v523, %v687
      %v689 = vpop.f32.mrb[0].mxu0
      %690 = vmatprep.mubr.bf16.mxu0 0
      %691 = vmatmul.mubr.bf16.gmra.mrb[0].mxu0 %v605
      %v692 = vpop.f32.mrb[0].mxu0
      %v693 = vadd.f32 %v528, %v692
      %v694 = vpop.f32.mrb[0].mxu0
      %v695 = vpop.f32.mrb[0].mxu0
      %v696 = vadd.f32 %v533, %v695
      %v697 = vpop.f32.mrb[0].mxu0
      %698 = vmatprep.mubr.bf16.mxu0 0
      %699 = vmatmul.mubr.bf16.gmra.mrb[0].mxu0 %v608
      %v700 = vpop.f32.mrb[0].mxu0
      %v701 = vadd.f32 %v538, %v700
      %v702 = vpop.f32.mrb[0].mxu0
      %v703 = vpop.f32.mrb[0].mxu0
      %v704 = vadd.f32 %v543, %v703
      %v705 = vpop.f32.mrb[0].mxu0
      %706 = vdwg.mxu0
      %vm707 = vcmp.gt.f32.partialorder %v645, 0.0
      %vm708 = vcmp.gt.f32.partialorder %v648, 0.0
      %vm709 = vcmp.gt.f32.partialorder %v653, 0.0
      %vm710 = vcmp.gt.f32.partialorder %v656, 0.0
      %vm711 = vcmp.gt.f32.partialorder %v661, 0.0
      %vm712 = vcmp.gt.f32.partialorder %v664, 0.0
      %vm713 = vcmp.gt.f32.partialorder %v669, 0.0
      %vm714 = vcmp.gt.f32.partialorder %v672, 0.0
      %vm715 = vcmp.gt.f32.partialorder %v677, 0.0
      %vm716 = vcmp.gt.f32.partialorder %v680, 0.0
      %vm717 = vcmp.gt.f32.partialorder %v685, 0.0
      %vm718 = vcmp.gt.f32.partialorder %v688, 0.0
      %vm719 = vcmp.gt.f32.partialorder %v693, 0.0
      %vm720 = vcmp.gt.f32.partialorder %v696, 0.0
      %vm721 = vcmp.gt.f32.partialorder %v701, 0.0
      %vm722 = vcmp.gt.f32.partialorder %v704, 0.0
      %v723 = vmul.f32 %v645, 0.2
      %v724 = vmul.f32 %v648, 0.2
      %v725 = vmul.f32 %v653, 0.2
      %v726 = vmul.f32 %v656, 0.2
      %v727 = vmul.f32 %v661, 0.2
      %v728 = vmul.f32 %v664, 0.2
      %v729 = vmul.f32 %v669, 0.2
      %v730 = vmul.f32 %v672, 0.2
      %v731 = vmul.f32 %v677, 0.2
      %v732 = vmul.f32 %v680, 0.2
      %v733 = vmul.f32 %v685, 0.2
      %v734 = vmul.f32 %v688, 0.2
      %v735 = vmul.f32 %v693, 0.2
      %v736 = vmul.f32 %v696, 0.2
      %v737 = vmul.f32 %v701, 0.2
      %v738 = vmul.f32 %v704, 0.2
      %v739 = vsel %vm707, %v645, %v723
      %v740 = vsel %vm708, %v648, %v724
      %v741 = vsel %vm709, %v653, %v725
      %v742 = vsel %vm710, %v656, %v726
      %v743 = vsel %vm711, %v661, %v727
      %v744 = vsel %vm712, %v664, %v728
      %v745 = vsel %vm713, %v669, %v729
      %v746 = vsel %vm714, %v672, %v730
      %v747 = vsel %vm715, %v677, %v731
      %v748 = vsel %vm716, %v680, %v732
      %v749 = vsel %vm717, %v685, %v733
      %v750 = vsel %vm718, %v688, %v734
      %v751 = vsel %vm719, %v693, %v735
      %v752 = vsel %vm720, %v696, %v736
      %v753 = vsel %vm721, %v701, %v737
      %v754 = vsel %vm722, %v704, %v738
      %v755 = vld [vmem:[%s5] sm:$0xff]
      %v756 = vld [vmem:[%s5 + $0x8] sm:$0xff]
      %v757 = vld [vmem:[%s5 + $0x10] sm:$0xff]
      %v758 = vld [vmem:[%s5 + $0x18] sm:$0xff]
      %v759 = vld [vmem:[%s5 + $0x20] sm:$0xff]
      %v760 = vld [vmem:[%s5 + $0x28] sm:$0xff]
      %v761 = vld [vmem:[%s5 + $0x30] sm:$0xff]
      %v762 = vld [vmem:[%s5 + $0x38] sm:$0xff]
      %v763 = vld [vmem:[%s5 + $0x40] sm:$0xff]
      %v764 = vld [vmem:[%s5 + $0x48] sm:$0xff]
      %v765 = vld [vmem:[%s5 + $0x50] sm:$0xff]
      %v766 = vld [vmem:[%s5 + $0x58] sm:$0xff]
      %v767 = vld [vmem:[%s5 + $0x60] sm:$0xff]
      %v768 = vld [vmem:[%s5 + $0x68] sm:$0xff]
      %v769 = vld [vmem:[%s5 + $0x70] sm:$0xff]
      %v770 = vld [vmem:[%s5 + $0x78] sm:$0xff]
      %772 = vset.pattern.permute.xlu0 0
      %773 = vperm.xlu0 %772, %v755
      %v774 = vpop.permute.xlu0 %773
      %777 = vset.pattern.permute.xlu0 0
      %778 = vperm.xlu0 %777, %v756
      %v779 = vpop.permute.xlu0 %778
      %782 = vset.pattern.permute.xlu0 0
      %783 = vperm.xlu0 %782, %v757
      %v784 = vpop.permute.xlu0 %783
      %787 = vset.pattern.permute.xlu0 0
      %788 = vperm.xlu0 %787, %v758
      %v789 = vpop.permute.xlu0 %788
      %792 = vset.pattern.permute.xlu0 0
      %793 = vperm.xlu0 %792, %v759
      %v794 = vpop.permute.xlu0 %793
      %797 = vset.pattern.permute.xlu0 0
      %798 = vperm.xlu0 %797, %v760
      %v799 = vpop.permute.xlu0 %798
      %802 = vset.pattern.permute.xlu0 0
      %803 = vperm.xlu0 %802, %v761
      %v804 = vpop.permute.xlu0 %803
      %807 = vset.pattern.permute.xlu0 0
      %808 = vperm.xlu0 %807, %v762
      %v809 = vpop.permute.xlu0 %808
      %812 = vset.pattern.permute.xlu0 0
      %813 = vperm.xlu0 %812, %v763
      %v814 = vpop.permute.xlu0 %813
      %817 = vset.pattern.permute.xlu0 0
      %818 = vperm.xlu0 %817, %v764
      %v819 = vpop.permute.xlu0 %818
      %822 = vset.pattern.permute.xlu0 0
      %823 = vperm.xlu0 %822, %v765
      %v824 = vpop.permute.xlu0 %823
      %827 = vset.pattern.permute.xlu0 0
      %828 = vperm.xlu0 %827, %v766
      %v829 = vpop.permute.xlu0 %828
      %832 = vset.pattern.permute.xlu0 0
      %833 = vperm.xlu0 %832, %v767
      %v834 = vpop.permute.xlu0 %833
      %837 = vset.pattern.permute.xlu0 0
      %838 = vperm.xlu0 %837, %v768
      %v839 = vpop.permute.xlu0 %838
      %842 = vset.pattern.permute.xlu0 0
      %843 = vperm.xlu0 %842, %v769
      %v844 = vpop.permute.xlu0 %843
      %847 = vset.pattern.permute.xlu0 0
      %848 = vperm.xlu0 %847, %v770
      %v849 = vpop.permute.xlu0 %848
      %v851 = vmul.f32 %v739, %v774
      %v852 = vmul.f32 %v740, %v779
      %v853 = vmul.f32 %v741, %v784
      %v854 = vmul.f32 %v742, %v789
      %v855 = vmul.f32 %v743, %v794
      %v856 = vmul.f32 %v744, %v799
      %v857 = vmul.f32 %v745, %v804
      %v858 = vmul.f32 %v746, %v809
      %v859 = vmul.f32 %v747, %v814
      %v860 = vmul.f32 %v748, %v819
      %v861 = vmul.f32 %v749, %v824
      %v862 = vmul.f32 %v750, %v829
      %v863 = vmul.f32 %v751, %v834
      %v864 = vmul.f32 %v752, %v839
      %v865 = vmul.f32 %v753, %v844
      %v866 = vmul.f32 %v754, %v849
      %v867 = vadd.f32 %v851, %v852
      %v868 = vadd.f32 %v867, %v853
      %v869 = vadd.f32 %v868, %v854
      %v870 = vadd.f32 %v869, %v855
      %v871 = vadd.f32 %v870, %v856
      %v872 = vadd.f32 %v871, %v857
      %v873 = vadd.f32 %v872, %v858
      %v874 = vadd.f32 %v873, %v859
      %v875 = vadd.f32 %v874, %v860
      %v876 = vadd.f32 %v875, %v861
      %v877 = vadd.f32 %v876, %v862
      %v878 = vadd.f32 %v877, %v863
      %v879 = vadd.f32 %v878, %v864
      %v880 = vadd.f32 %v879, %v865
      %v881 = vadd.f32 %v880, %v866
      %v882 = vrot.slane %v881, 4
      %v883 = vadd.f32 %v881, %v882
      %v884 = vrot.slane %v883, 2
      %v885 = vadd.f32 %v883, %v884
      %v886 = vrot.slane %v885, 1
      %v887 = vadd.f32 %v885, %v886
      %888 = vst [vmem:[%s244] sm:$0x1] %v887
      %p889 = scmp.lt.s32.totalorder %s17, 3
      %s890 = scalar_select %p889, %s17, 3
      %s891 = scalar_lea.vmem %s6, %s890
      // Predicated region
      $region45: #{pixel_discriminator_forward.3} parent=43 // pred_check
        %p892 = pneg %p166
      $region46: #{pixel_discriminator_forward.3} parent=43 // pred_check_branch
        %894 = sbr.rel (%p892) target = $region48
      $region47: #{pixel_discriminator_forward.3} parent=43 // pred_region
        _
      $region48: #{pixel_discriminator_forward.3} parent=43 // pred_fallthru
        _
    $region44: #{pixel_discriminator_forward.3} parent=5 // pred_fallthru
      _
    %p895 = scmp.le.s32.totalorder 2, %s12
    // Predicated region
    $region49: #{pixel_discriminator_forward.3} parent=5 // pred_check
      %p896 = pneg %p895
    $region50: #{pixel_discriminator_forward.3} parent=5 // pred_check_branch
      %898 = sbr.rel (%p896) target = $region52
    $region51: #{pixel_discriminator_forward.3} parent=5 // pred_region
      %s899 = ssub.s32 %s12, 2
      // Predicated region
      $region53: #{pixel_discriminator_forward.3} parent=51 // pred_check
        %p900 = pneg %p172
      $region54: #{pixel_discriminator_forward.3} parent=51 // pred_check_branch
        %902 = sbr.rel (%p900) target = $region56
      $region55: #{pixel_discriminator_forward.3} parent=51 // pred_region
        %p903 = scmp.lt.s32.totalorder %s18, 3
        %s904 = scalar_select %p903, %s18, 3
        %s905 = scalar_lea.vmem %s6, %s904
      $region56: #{pixel_discriminator_forward.3} parent=51 // pred_fallthru
        _
    $region52: #{pixel_discriminator_forward.3} parent=5 // pred_fallthru
      _
  $region6: #{pixel_discriminator_forward.3} parent=0 // loop_footer
    %s16 = sadd.s32 1, %s12
  $region7: #{pixel_discriminator_forward.3} parent=0 // loop_footer_branch
    %11 = sbr.rel target = $region3
  $region8: #{pixel_discriminator_forward.3} parent=0 // loop_exit
    _

</llo_original>
